<compile_context>
chip_gen: v6e
topology: v6e:2x2x1
jax: 0.10.0
libtpu: 0.0.40
codegen_flags: <defaults>
</compile_context>

<pallas_src>
import functools

import jax
import jax.numpy as jnp
from jax import lax
from jax.experimental import pallas as pl
from jax.experimental.pallas import tpu as pltpu

# Model hyper-parameters (small, consistent with the module: num_heads * head_size == n_embd)
N_EMBD = 32
NUM_HEADS = 4
HEAD_SIZE = N_EMBD // NUM_HEADS
SEQ_LEN = 8
BATCH = 2


# --------------------------------------------------------------------------- #
# Kernel
# --------------------------------------------------------------------------- #
def mha_kernel(x_ref, wqkv_ref, wpT_ref, bp_ref, o_ref, *,
               seq, num_heads, head_size):
    """One grid step: `rows/seq` batch elements, all heads, projection fused.

    x_ref    : (rows, C)  VMEM, bf16  (rows = B*T for 1-step grid, T for grid=(B,))
    wqkv_ref : (C, 3*C)   VMEM, bf16  fused [Wq*scale | Wk | Wv], head-major columns
    wpT_ref  : (C, C)     VMEM, bf16  wp.T  (out = cat @ wp.T + bp)
    bp_ref   : (1, C)     VMEM, f32
    o_ref    : (rows, C)  VMEM, f32
    """
    T, H, HS = seq, num_heads, head_size
    C = H * HS
    rows = x_ref.shape[0]
    n_batch = rows // T

    # One fused QKV projection (bf16 MXU operands, f32 accumulation).
    qkv = jnp.dot(x_ref[...], wqkv_ref[...],
                  preferred_element_type=jnp.float32)            # (rows, 3C) f32
    wpT = wpT_ref[...]                                           # (C, C) bf16
    bias = bp_ref[...]                                           # (1, C) f32

    for b in range(n_batch):                                     # static unroll
        blk = qkv[b * T:(b + 1) * T, :]                          # (T, 3C)
        acc = None
        for h in range(H):                                       # static unroll
            # Static lane slices out of the fused QKV result.
            # Softmax scale is already folded into the Wq columns.
            q = blk[:, h * HS:(h + 1) * HS]                      # (T, HS) f32
            k = blk[:, C + h * HS:C + (h + 1) * HS]              # (T, HS) f32
            v = blk[:, 2 * C + h * HS:2 * C + (h + 1) * HS]      # (T, HS) f32

            # Scores: contract on the last dim of both operands (trans_b form),
            # bf16 operands -> single MXU pass, f32 accumulation.
            s = lax.dot_general(q.astype(jnp.bfloat16), k.astype(jnp.bfloat16),
                                (((1,), (1,)), ((), ())),
                                preferred_element_type=jnp.float32)   # (T, T) f32

            # Numerically-stable softmax, exact normalizer, all in f32 (VPU/EUP).
            s = s - jnp.max(s, axis=-1, keepdims=True)
            p = jnp.exp(s)
            p = p / jnp.sum(p, axis=-1, keepdims=True)
            # TODO(synk): attention-weight dropout would mask `p` here (training mode).

            ho = jnp.dot(p.astype(jnp.bfloat16), v.astype(jnp.bfloat16),
                         preferred_element_type=jnp.float32)     # (T, HS) f32

            # Accumulate this head's contribution to the output projection:
            # replaces concat(head_outs, -1) @ wp.T with zero cross-lane movement.
            contrib = jnp.dot(ho.astype(jnp.bfloat16), wpT[h * HS:(h + 1) * HS, :],
                              preferred_element_type=jnp.float32)  # (T, C) f32
            acc = contrib if acc is None else acc + contrib

        o_ref[b * T:(b + 1) * T, :] = (acc + bias).astype(o_ref.dtype)


# --------------------------------------------------------------------------- #
# Parameter packing — done ONCE per parameter set, not per forward call.
# --------------------------------------------------------------------------- #
def pack_mha_params(wq, wk, wv, wp, bp, *, dot_dtype=jnp.bfloat16):
    """wq/wk/wv: (H, C, hs) in x@W form; wp: (C, C) PyTorch layout; bp: (C,).

    Returns (w_qkv, wpT, bp2) ready for the kernel:
      w_qkv : (C, 3C) dot_dtype, head-major columns, softmax scale folded into Wq
      wpT   : (C, C)  dot_dtype
      bp2   : (1, C)  f32
    """
    H, C, HS = wq.shape

    def head_major(w):                                           # (H, C, HS) -> (C, H*HS)
        return jnp.transpose(w, (1, 0, 2)).reshape(C, H * HS)

    # NOTE: the module scales by n_embd**-0.5 (C = x.shape[-1]), not head_size**-0.5.
    scale = jnp.float32(C) ** jnp.float32(-0.5)
    w_qkv = jnp.concatenate(
        [head_major(wq) * scale, head_major(wk), head_major(wv)], axis=1)  # (C, 3C) f32
    return (w_qkv.astype(dot_dtype),
            wp.T.astype(dot_dtype),                              # out = cat @ wp.T + bp
            bp.reshape(1, C).astype(jnp.float32))


def _use_batch_grid():
    """True on 2-TC chips (v7x): shard batch across TensorCores via the grid."""
    try:
        kind = jax.devices()[0].device_kind.lower()
    except Exception:
        return False
    return "v7" in kind


# --------------------------------------------------------------------------- #
# Forward wrapper (jit this; packing is NOT on this path)
# --------------------------------------------------------------------------- #
def mha_forward(x, w_qkv, wpT, bp2, *, num_heads, use_batch_grid=False):
    B, T, C = x.shape
    HS = C // num_heads

    x_flat = x.reshape(B * T, C).astype(w_qkv.dtype)             # bf16 MXU operand

    kernel = functools.partial(mha_kernel, seq=T, num_heads=num_heads, head_size=HS)

    if use_batch_grid:
        # v7x: one batch element per grid step, "parallel" -> split across the 2 TCs.
        grid = (B,)
        x_spec = pl.BlockSpec((T, C), lambda b: (b, 0))
        o_spec = pl.BlockSpec((T, C), lambda b: (b, 0))
        semantics = ("parallel",)
    else:
        # v5e/v6e (1 TC): single step, batch folded into the block; extra grid
        # steps are pure per-step overhead at this size.
        grid = (1,)
        x_spec = pl.BlockSpec((B * T, C), lambda i: (0, 0))
        o_spec = pl.BlockSpec((B * T, C), lambda i: (0, 0))
        semantics = ("arbitrary",)

    out_flat = pl.pallas_call(
        kernel,
        out_shape=jax.ShapeDtypeStruct((B * T, C), jnp.float32),
        grid_spec=pltpu.PrefetchScalarGridSpec(
            num_scalar_prefetch=0,
            grid=grid,
            in_specs=[
                x_spec,                                          # activations
                pl.BlockSpec((C, 3 * C), lambda i: (0, 0)),      # fused W_qkv (bf16)
                pl.BlockSpec((C, C), lambda i: (0, 0)),          # wp^T (bf16)
                pl.BlockSpec((1, C), lambda i: (0, 0)),          # bias (f32)
            ],
            out_specs=o_spec,
        ),
        compiler_params=pltpu.CompilerParams(dimension_semantics=semantics),
    )(x_flat, w_qkv, wpT, bp2)

    return out_flat.reshape(B, T, C).astype(x.dtype)


# --------------------------------------------------------------------------- #
# Pure-JAX reference matching the PyTorch forward (eval mode)
# --------------------------------------------------------------------------- #
def reference(x, wq, wk, wv, wp, bp):
    B, T, C = x.shape
    outs = []
    for h in range(wq.shape[0]):
        q = x @ wq[h]
        k = x @ wk[h]
        v = x @ wv[h]
        wei = (q @ jnp.swapaxes(k, -2, -1)) * (C ** -0.5)
        wei = jax.nn.softmax(wei, axis=-1)
        outs.append(wei @ v)
    cat = jnp.concatenate(outs, axis=-1)
    return cat @ wp.T + bp


if __name__ == "__main__":
    key = jax.random.PRNGKey(0)
    kx, kq, kk, kv, kp, kb = jax.random.split(key, 6)

    # deterministic synthetic parameters (shapes from the module's __init__)
    x = jax.random.normal(kx, (BATCH, SEQ_LEN, N_EMBD), dtype=jnp.float32)
    wq = jax.random.normal(kq, (NUM_HEADS, N_EMBD, HEAD_SIZE), jnp.float32) * 0.1
    wk = jax.random.normal(kk, (NUM_HEADS, N_EMBD, HEAD_SIZE), jnp.float32) * 0.1
    wv = jax.random.normal(kv, (NUM_HEADS, N_EMBD, HEAD_SIZE), jnp.float32) * 0.1
    wp = jax.random.normal(kp, (N_EMBD, N_EMBD), jnp.float32) * 0.1
    bp = jax.random.normal(kb, (N_EMBD,), jnp.float32) * 0.1

    # One-time (amortized) packing; the per-call path only touches activations.
    w_qkv, wpT, bp2 = pack_mha_params(wq, wk, wv, wp, bp)
    w_qkv, wpT, bp2 = jax.block_until_ready((w_qkv, wpT, bp2))

    mha = jax.jit(functools.partial(mha_forward,
                                    num_heads=NUM_HEADS,
                                    use_batch_grid=_use_batch_grid()))

    out = mha(x, w_qkv, wpT, bp2)
    out = jax.block_until_ready(out)

    ref = reference(x, wq, wk, wv, wp, bp)
    assert out.shape == (BATCH, SEQ_LEN, N_EMBD)
    # Tolerance 2e-2: the MXU operands (x, W_qkv, wp^T, q/k, p/v, ho) are bf16
    # (f32 accumulation); softmax itself and the normalizer are exact f32.
    assert jnp.allclose(out, ref, atol=2e-2, rtol=2e-2), "mismatch vs pure-JAX reference"

    print("KERNEL_OK")
</pallas_src>

<mosaic_0001>
module attributes {stable_mosaic.version = 11 : i64} {
  func.func @mha_kernel(%arg0: i32, %arg1: memref<16x32xbf16, #tpu.memory_space<vmem>>, %arg2: memref<32x96xbf16, #tpu.memory_space<vmem>>, %arg3: memref<32x32xbf16, #tpu.memory_space<vmem>>, %arg4: memref<1x32xf32, #tpu.memory_space<vmem>>, %arg5: memref<16x32xf32, #tpu.memory_space<vmem>>) attributes {dimension_semantics = [#tpu.dimension_semantics<arbitrary>], iteration_bounds = array<i64: 1>, scalar_prefetch = 0 : i64, scratch_operands = 0 : i64, tpu.core_type = #tpu.core_type<tc>, window_params = [{pipeline_mode = #tpu.pipeline_mode<synchronous>, transform_indices = @transform_0, window_bounds = array<i64: 16, 32>}, {pipeline_mode = #tpu.pipeline_mode<synchronous>, transform_indices = @transform_1, window_bounds = array<i64: 32, 96>}, {pipeline_mode = #tpu.pipeline_mode<synchronous>, transform_indices = @transform_2, window_bounds = array<i64: 32, 32>}, {pipeline_mode = #tpu.pipeline_mode<synchronous>, transform_indices = @transform_3, window_bounds = array<i64: 1, 32>}, {pipeline_mode = #tpu.pipeline_mode<synchronous>, transform_indices = @transform_4, window_bounds = array<i64: 16, 32>}]} {
    %c0 = arith.constant 0 : index
    %c0_0 = arith.constant 0 : index
    %0 = vector.load %arg1[%c0, %c0_0] : memref<16x32xbf16, #tpu.memory_space<vmem>>, vector<16x32xbf16>
    %c0_1 = arith.constant 0 : index
    %c0_2 = arith.constant 0 : index
    %1 = vector.load %arg2[%c0_1, %c0_2] : memref<32x96xbf16, #tpu.memory_space<vmem>>, vector<32x96xbf16>
    %cst = arith.constant dense<0.000000e+00> : vector<16x96xf32>
    %2 = tpu.matmul %0, %1, %cst {dimension_numbers = #tpu.dot_dimension_numbers<[1], [0], [0], [1], [0, 0, 1, 1], [], []>} : vector<16x32xbf16>, vector<32x96xbf16>, vector<16x96xf32> -> vector<16x96xf32>
    %c0_3 = arith.constant 0 : index
    %c0_4 = arith.constant 0 : index
    %3 = vector.load %arg3[%c0_3, %c0_4] : memref<32x32xbf16, #tpu.memory_space<vmem>>, vector<32x32xbf16>
    %c0_5 = arith.constant 0 : index
    %c0_6 = arith.constant 0 : index
    %4 = vector.load %arg4[%c0_5, %c0_6] : memref<1x32xf32, #tpu.memory_space<vmem>>, vector<1x32xf32>
    %5 = vector.extract_strided_slice %2 {offsets = [0, 0], sizes = [8, 96], strides = [1, 1]} : vector<16x96xf32> to vector<8x96xf32>
    %6 = vector.extract_strided_slice %5 {offsets = [0, 0], sizes = [8, 8], strides = [1, 1]} : vector<8x96xf32> to vector<8x8xf32>
    %7 = vector.extract_strided_slice %5 {offsets = [0, 32], sizes = [8, 8], strides = [1, 1]} : vector<8x96xf32> to vector<8x8xf32>
    %8 = vector.extract_strided_slice %5 {offsets = [0, 64], sizes = [8, 8], strides = [1, 1]} : vector<8x96xf32> to vector<8x8xf32>
    %9 = arith.truncf %6 : vector<8x8xf32> to vector<8x8xbf16>
    %10 = arith.truncf %7 : vector<8x8xf32> to vector<8x8xbf16>
    %cst_7 = arith.constant dense<0.000000e+00> : vector<8x8xf32>
    %11 = tpu.matmul %9, %10, %cst_7 {dimension_numbers = #tpu.dot_dimension_numbers<[1], [1], [0], [0], [0, 0, 1, 0], [], []>} : vector<8x8xbf16>, vector<8x8xbf16>, vector<8x8xf32> -> vector<8x8xf32>
    %cst_8 = arith.constant dense<0xFF800000> : vector<8xf32>
    %12 = vector.multi_reduction <maximumf>, %11, %cst_8 [1] : vector<8x8xf32> to vector<8xf32>
    %13 = vector.shape_cast %12 : vector<8xf32> to vector<8x1xf32>
    %14 = vector.broadcast %13 : vector<8x1xf32> to vector<8x8xf32>
    %15 = arith.subf %11, %14 : vector<8x8xf32>
    %16 = math.exp %15 : vector<8x8xf32>
    %cst_9 = arith.constant dense<0.000000e+00> : vector<8xf32>
    %17 = vector.multi_reduction <add>, %16, %cst_9 [1] : vector<8x8xf32> to vector<8xf32>
    %18 = vector.shape_cast %17 : vector<8xf32> to vector<8x1xf32>
    %19 = vector.broadcast %18 : vector<8x1xf32> to vector<8x8xf32>
    %20 = arith.divf %16, %19 : vector<8x8xf32>
    %21 = arith.truncf %20 : vector<8x8xf32> to vector<8x8xbf16>
    %22 = arith.truncf %8 : vector<8x8xf32> to vector<8x8xbf16>
    %cst_10 = arith.constant dense<0.000000e+00> : vector<8x8xf32>
    %23 = tpu.matmul %21, %22, %cst_10 {dimension_numbers = #tpu.dot_dimension_numbers<[1], [0], [0], [1], [0, 0, 1, 1], [], []>} : vector<8x8xbf16>, vector<8x8xbf16>, vector<8x8xf32> -> vector<8x8xf32>
    %24 = arith.truncf %23 : vector<8x8xf32> to vector<8x8xbf16>
    %25 = vector.extract_strided_slice %3 {offsets = [0, 0], sizes = [8, 32], strides = [1, 1]} : vector<32x32xbf16> to vector<8x32xbf16>
    %cst_11 = arith.constant dense<0.000000e+00> : vector<8x32xf32>
    %26 = tpu.matmul %24, %25, %cst_11 {dimension_numbers = #tpu.dot_dimension_numbers<[1], [0], [0], [1], [0, 0, 1, 1], [], []>} : vector<8x8xbf16>, vector<8x32xbf16>, vector<8x32xf32> -> vector<8x32xf32>
    %27 = vector.extract_strided_slice %5 {offsets = [0, 8], sizes = [8, 8], strides = [1, 1]} : vector<8x96xf32> to vector<8x8xf32>
    %28 = vector.extract_strided_slice %5 {offsets = [0, 40], sizes = [8, 8], strides = [1, 1]} : vector<8x96xf32> to vector<8x8xf32>
    %29 = vector.extract_strided_slice %5 {offsets = [0, 72], sizes = [8, 8], strides = [1, 1]} : vector<8x96xf32> to vector<8x8xf32>
    %30 = arith.truncf %27 : vector<8x8xf32> to vector<8x8xbf16>
    %31 = arith.truncf %28 : vector<8x8xf32> to vector<8x8xbf16>
    %cst_12 = arith.constant dense<0.000000e+00> : vector<8x8xf32>
    %32 = tpu.matmul %30, %31, %cst_12 {dimension_numbers = #tpu.dot_dimension_numbers<[1], [1], [0], [0], [0, 0, 1, 0], [], []>} : vector<8x8xbf16>, vector<8x8xbf16>, vector<8x8xf32> -> vector<8x8xf32>
    %cst_13 = arith.constant dense<0xFF800000> : vector<8xf32>
    %33 = vector.multi_reduction <maximumf>, %32, %cst_13 [1] : vector<8x8xf32> to vector<8xf32>
    %34 = vector.shape_cast %33 : vector<8xf32> to vector<8x1xf32>
    %35 = vector.broadcast %34 : vector<8x1xf32> to vector<8x8xf32>
    %36 = arith.subf %32, %35 : vector<8x8xf32>
    %37 = math.exp %36 : vector<8x8xf32>
    %cst_14 = arith.constant dense<0.000000e+00> : vector<8xf32>
    %38 = vector.multi_reduction <add>, %37, %cst_14 [1] : vector<8x8xf32> to vector<8xf32>
    %39 = vector.shape_cast %38 : vector<8xf32> to vector<8x1xf32>
    %40 = vector.broadcast %39 : vector<8x1xf32> to vector<8x8xf32>
    %41 = arith.divf %37, %40 : vector<8x8xf32>
    %42 = arith.truncf %41 : vector<8x8xf32> to vector<8x8xbf16>
    %43 = arith.truncf %29 : vector<8x8xf32> to vector<8x8xbf16>
    %cst_15 = arith.constant dense<0.000000e+00> : vector<8x8xf32>
    %44 = tpu.matmul %42, %43, %cst_15 {dimension_numbers = #tpu.dot_dimension_numbers<[1], [0], [0], [1], [0, 0, 1, 1], [], []>} : vector<8x8xbf16>, vector<8x8xbf16>, vector<8x8xf32> -> vector<8x8xf32>
    %45 = arith.truncf %44 : vector<8x8xf32> to vector<8x8xbf16>
    %46 = vector.extract_strided_slice %3 {offsets = [8, 0], sizes = [8, 32], strides = [1, 1]} : vector<32x32xbf16> to vector<8x32xbf16>
    %cst_16 = arith.constant dense<0.000000e+00> : vector<8x32xf32>
    %47 = tpu.matmul %45, %46, %cst_16 {dimension_numbers = #tpu.dot_dimension_numbers<[1], [0], [0], [1], [0, 0, 1, 1], [], []>} : vector<8x8xbf16>, vector<8x32xbf16>, vector<8x32xf32> -> vector<8x32xf32>
    %48 = arith.addf %26, %47 : vector<8x32xf32>
    %49 = vector.extract_strided_slice %5 {offsets = [0, 16], sizes = [8, 8], strides = [1, 1]} : vector<8x96xf32> to vector<8x8xf32>
    %50 = vector.extract_strided_slice %5 {offsets = [0, 48], sizes = [8, 8], strides = [1, 1]} : vector<8x96xf32> to vector<8x8xf32>
    %51 = vector.extract_strided_slice %5 {offsets = [0, 80], sizes = [8, 8], strides = [1, 1]} : vector<8x96xf32> to vector<8x8xf32>
    %52 = arith.truncf %49 : vector<8x8xf32> to vector<8x8xbf16>
    %53 = arith.truncf %50 : vector<8x8xf32> to vector<8x8xbf16>
    %cst_17 = arith.constant dense<0.000000e+00> : vector<8x8xf32>
    %54 = tpu.matmul %52, %53, %cst_17 {dimension_numbers = #tpu.dot_dimension_numbers<[1], [1], [0], [0], [0, 0, 1, 0], [], []>} : vector<8x8xbf16>, vector<8x8xbf16>, vector<8x8xf32> -> vector<8x8xf32>
    %cst_18 = arith.constant dense<0xFF800000> : vector<8xf32>
    %55 = vector.multi_reduction <maximumf>, %54, %cst_18 [1] : vector<8x8xf32> to vector<8xf32>
    %56 = vector.shape_cast %55 : vector<8xf32> to vector<8x1xf32>
    %57 = vector.broadcast %56 : vector<8x1xf32> to vector<8x8xf32>
    %58 = arith.subf %54, %57 : vector<8x8xf32>
    %59 = math.exp %58 : vector<8x8xf32>
    %cst_19 = arith.constant dense<0.000000e+00> : vector<8xf32>
    %60 = vector.multi_reduction <add>, %59, %cst_19 [1] : vector<8x8xf32> to vector<8xf32>
    %61 = vector.shape_cast %60 : vector<8xf32> to vector<8x1xf32>
    %62 = vector.broadcast %61 : vector<8x1xf32> to vector<8x8xf32>
    %63 = arith.divf %59, %62 : vector<8x8xf32>
    %64 = arith.truncf %63 : vector<8x8xf32> to vector<8x8xbf16>
    %65 = arith.truncf %51 : vector<8x8xf32> to vector<8x8xbf16>
    %cst_20 = arith.constant dense<0.000000e+00> : vector<8x8xf32>
    %66 = tpu.matmul %64, %65, %cst_20 {dimension_numbers = #tpu.dot_dimension_numbers<[1], [0], [0], [1], [0, 0, 1, 1], [], []>} : vector<8x8xbf16>, vector<8x8xbf16>, vector<8x8xf32> -> vector<8x8xf32>
    %67 = arith.truncf %66 : vector<8x8xf32> to vector<8x8xbf16>
    %68 = vector.extract_strided_slice %3 {offsets = [16, 0], sizes = [8, 32], strides = [1, 1]} : vector<32x32xbf16> to vector<8x32xbf16>
    %cst_21 = arith.constant dense<0.000000e+00> : vector<8x32xf32>
    %69 = tpu.matmul %67, %68, %cst_21 {dimension_numbers = #tpu.dot_dimension_numbers<[1], [0], [0], [1], [0, 0, 1, 1], [], []>} : vector<8x8xbf16>, vector<8x32xbf16>, vector<8x32xf32> -> vector<8x32xf32>
    %70 = arith.addf %48, %69 : vector<8x32xf32>
    %71 = vector.extract_strided_slice %5 {offsets = [0, 24], sizes = [8, 8], strides = [1, 1]} : vector<8x96xf32> to vector<8x8xf32>
    %72 = vector.extract_strided_slice %5 {offsets = [0, 56], sizes = [8, 8], strides = [1, 1]} : vector<8x96xf32> to vector<8x8xf32>
    %73 = vector.extract_strided_slice %5 {offsets = [0, 88], sizes = [8, 8], strides = [1, 1]} : vector<8x96xf32> to vector<8x8xf32>
    %74 = arith.truncf %71 : vector<8x8xf32> to vector<8x8xbf16>
    %75 = arith.truncf %72 : vector<8x8xf32> to vector<8x8xbf16>
    %cst_22 = arith.constant dense<0.000000e+00> : vector<8x8xf32>
    %76 = tpu.matmul %74, %75, %cst_22 {dimension_numbers = #tpu.dot_dimension_numbers<[1], [1], [0], [0], [0, 0, 1, 0], [], []>} : vector<8x8xbf16>, vector<8x8xbf16>, vector<8x8xf32> -> vector<8x8xf32>
    %cst_23 = arith.constant dense<0xFF800000> : vector<8xf32>
    %77 = vector.multi_reduction <maximumf>, %76, %cst_23 [1] : vector<8x8xf32> to vector<8xf32>
    %78 = vector.shape_cast %77 : vector<8xf32> to vector<8x1xf32>
    %79 = vector.broadcast %78 : vector<8x1xf32> to vector<8x8xf32>
    %80 = arith.subf %76, %79 : vector<8x8xf32>
    %81 = math.exp %80 : vector<8x8xf32>
    %cst_24 = arith.constant dense<0.000000e+00> : vector<8xf32>
    %82 = vector.multi_reduction <add>, %81, %cst_24 [1] : vector<8x8xf32> to vector<8xf32>
    %83 = vector.shape_cast %82 : vector<8xf32> to vector<8x1xf32>
    %84 = vector.broadcast %83 : vector<8x1xf32> to vector<8x8xf32>
    %85 = arith.divf %81, %84 : vector<8x8xf32>
    %86 = arith.truncf %85 : vector<8x8xf32> to vector<8x8xbf16>
    %87 = arith.truncf %73 : vector<8x8xf32> to vector<8x8xbf16>
    %cst_25 = arith.constant dense<0.000000e+00> : vector<8x8xf32>
    %88 = tpu.matmul %86, %87, %cst_25 {dimension_numbers = #tpu.dot_dimension_numbers<[1], [0], [0], [1], [0, 0, 1, 1], [], []>} : vector<8x8xbf16>, vector<8x8xbf16>, vector<8x8xf32> -> vector<8x8xf32>
    %89 = arith.truncf %88 : vector<8x8xf32> to vector<8x8xbf16>
    %90 = vector.extract_strided_slice %3 {offsets = [24, 0], sizes = [8, 32], strides = [1, 1]} : vector<32x32xbf16> to vector<8x32xbf16>
    %cst_26 = arith.constant dense<0.000000e+00> : vector<8x32xf32>
    %91 = tpu.matmul %89, %90, %cst_26 {dimension_numbers = #tpu.dot_dimension_numbers<[1], [0], [0], [1], [0, 0, 1, 1], [], []>} : vector<8x8xbf16>, vector<8x32xbf16>, vector<8x32xf32> -> vector<8x32xf32>
    %92 = arith.addf %70, %91 : vector<8x32xf32>
    %93 = vector.broadcast %4 : vector<1x32xf32> to vector<8x32xf32>
    %94 = arith.addf %92, %93 : vector<8x32xf32>
    %c0_27 = arith.constant 0 : index
    %c0_28 = arith.constant 0 : index
    %95 = vector.load %arg5[%c0_27, %c0_28] : memref<16x32xf32, #tpu.memory_space<vmem>>, vector<8x32xf32>
    tpu.vector_store %arg5[%c0_27, %c0_28], %94 {strides = array<i32>} : memref<16x32xf32, #tpu.memory_space<vmem>>, vector<8x32xf32>,
    %96 = vector.extract_strided_slice %2 {offsets = [8, 0], sizes = [8, 96], strides = [1, 1]} : vector<16x96xf32> to vector<8x96xf32>
    %97 = vector.extract_strided_slice %96 {offsets = [0, 0], sizes = [8, 8], strides = [1, 1]} : vector<8x96xf32> to vector<8x8xf32>
    %98 = vector.extract_strided_slice %96 {offsets = [0, 32], sizes = [8, 8], strides = [1, 1]} : vector<8x96xf32> to vector<8x8xf32>
    %99 = vector.extract_strided_slice %96 {offsets = [0, 64], sizes = [8, 8], strides = [1, 1]} : vector<8x96xf32> to vector<8x8xf32>
    %100 = arith.truncf %97 : vector<8x8xf32> to vector<8x8xbf16>
    %101 = arith.truncf %98 : vector<8x8xf32> to vector<8x8xbf16>
    %cst_29 = arith.constant dense<0.000000e+00> : vector<8x8xf32>
    %102 = tpu.matmul %100, %101, %cst_29 {dimension_numbers = #tpu.dot_dimension_numbers<[1], [1], [0], [0], [0, 0, 1, 0], [], []>} : vector<8x8xbf16>, vector<8x8xbf16>, vector<8x8xf32> -> vector<8x8xf32>
    %cst_30 = arith.constant dense<0xFF800000> : vector<8xf32>
    %103 = vector.multi_reduction <maximumf>, %102, %cst_30 [1] : vector<8x8xf32> to vector<8xf32>
    %104 = vector.shape_cast %103 : vector<8xf32> to vector<8x1xf32>
    %105 = vector.broadcast %104 : vector<8x1xf32> to vector<8x8xf32>
    %106 = arith.subf %102, %105 : vector<8x8xf32>
    %107 = math.exp %106 : vector<8x8xf32>
    %cst_31 = arith.constant dense<0.000000e+00> : vector<8xf32>
    %108 = vector.multi_reduction <add>, %107, %cst_31 [1] : vector<8x8xf32> to vector<8xf32>
    %109 = vector.shape_cast %108 : vector<8xf32> to vector<8x1xf32>
    %110 = vector.broadcast %109 : vector<8x1xf32> to vector<8x8xf32>
    %111 = arith.divf %107, %110 : vector<8x8xf32>
    %112 = arith.truncf %111 : vector<8x8xf32> to vector<8x8xbf16>
    %113 = arith.truncf %99 : vector<8x8xf32> to vector<8x8xbf16>
    %cst_32 = arith.constant dense<0.000000e+00> : vector<8x8xf32>
    %114 = tpu.matmul %112, %113, %cst_32 {dimension_numbers = #tpu.dot_dimension_numbers<[1], [0], [0], [1], [0, 0, 1, 1], [], []>} : vector<8x8xbf16>, vector<8x8xbf16>, vector<8x8xf32> -> vector<8x8xf32>
    %115 = arith.truncf %114 : vector<8x8xf32> to vector<8x8xbf16>
    %116 = vector.extract_strided_slice %3 {offsets = [0, 0], sizes = [8, 32], strides = [1, 1]} : vector<32x32xbf16> to vector<8x32xbf16>
    %cst_33 = arith.constant dense<0.000000e+00> : vector<8x32xf32>
    %117 = tpu.matmul %115, %116, %cst_33 {dimension_numbers = #tpu.dot_dimension_numbers<[1], [0], [0], [1], [0, 0, 1, 1], [], []>} : vector<8x8xbf16>, vector<8x32xbf16>, vector<8x32xf32> -> vector<8x32xf32>
    %118 = vector.extract_strided_slice %96 {offsets = [0, 8], sizes = [8, 8], strides = [1, 1]} : vector<8x96xf32> to vector<8x8xf32>
    %119 = vector.extract_strided_slice %96 {offsets = [0, 40], sizes = [8, 8], strides = [1, 1]} : vector<8x96xf32> to vector<8x8xf32>
    %120 = vector.extract_strided_slice %96 {offsets = [0, 72], sizes = [8, 8], strides = [1, 1]} : vector<8x96xf32> to vector<8x8xf32>
    %121 = arith.truncf %118 : vector<8x8xf32> to vector<8x8xbf16>
    %122 = arith.truncf %119 : vector<8x8xf32> to vector<8x8xbf16>
    %cst_34 = arith.constant dense<0.000000e+00> : vector<8x8xf32>
    %123 = tpu.matmul %121, %122, %cst_34 {dimension_numbers = #tpu.dot_dimension_numbers<[1], [1], [0], [0], [0, 0, 1, 0], [], []>} : vector<8x8xbf16>, vector<8x8xbf16>, vector<8x8xf32> -> vector<8x8xf32>
    %cst_35 = arith.constant dense<0xFF800000> : vector<8xf32>
    %124 = vector.multi_reduction <maximumf>, %123, %cst_35 [1] : vector<8x8xf32> to vector<8xf32>
    %125 = vector.shape_cast %124 : vector<8xf32> to vector<8x1xf32>
    %126 = vector.broadcast %125 : vector<8x1xf32> to vector<8x8xf32>
    %127 = arith.subf %123, %126 : vector<8x8xf32>
    %128 = math.exp %127 : vector<8x8xf32>
    %cst_36 = arith.constant dense<0.000000e+00> : vector<8xf32>
    %129 = vector.multi_reduction <add>, %128, %cst_36 [1] : vector<8x8xf32> to vector<8xf32>
    %130 = vector.shape_cast %129 : vector<8xf32> to vector<8x1xf32>
    %131 = vector.broadcast %130 : vector<8x1xf32> to vector<8x8xf32>
    %132 = arith.divf %128, %131 : vector<8x8xf32>
    %133 = arith.truncf %132 : vector<8x8xf32> to vector<8x8xbf16>
    %134 = arith.truncf %120 : vector<8x8xf32> to vector<8x8xbf16>
    %cst_37 = arith.constant dense<0.000000e+00> : vector<8x8xf32>
    %135 = tpu.matmul %133, %134, %cst_37 {dimension_numbers = #tpu.dot_dimension_numbers<[1], [0], [0], [1], [0, 0, 1, 1], [], []>} : vector<8x8xbf16>, vector<8x8xbf16>, vector<8x8xf32> -> vector<8x8xf32>
    %136 = arith.truncf %135 : vector<8x8xf32> to vector<8x8xbf16>
    %137 = vector.extract_strided_slice %3 {offsets = [8, 0], sizes = [8, 32], strides = [1, 1]} : vector<32x32xbf16> to vector<8x32xbf16>
    %cst_38 = arith.constant dense<0.000000e+00> : vector<8x32xf32>
    %138 = tpu.matmul %136, %137, %cst_38 {dimension_numbers = #tpu.dot_dimension_numbers<[1], [0], [0], [1], [0, 0, 1, 1], [], []>} : vector<8x8xbf16>, vector<8x32xbf16>, vector<8x32xf32> -> vector<8x32xf32>
    %139 = arith.addf %117, %138 : vector<8x32xf32>
    %140 = vector.extract_strided_slice %96 {offsets = [0, 16], sizes = [8, 8], strides = [1, 1]} : vector<8x96xf32> to vector<8x8xf32>
    %141 = vector.extract_strided_slice %96 {offsets = [0, 48], sizes = [8, 8], strides = [1, 1]} : vector<8x96xf32> to vector<8x8xf32>
    %142 = vector.extract_strided_slice %96 {offsets = [0, 80], sizes = [8, 8], strides = [1, 1]} : vector<8x96xf32> to vector<8x8xf32>
    %143 = arith.truncf %140 : vector<8x8xf32> to vector<8x8xbf16>
    %144 = arith.truncf %141 : vector<8x8xf32> to vector<8x8xbf16>
    %cst_39 = arith.constant dense<0.000000e+00> : vector<8x8xf32>
    %145 = tpu.matmul %143, %144, %cst_39 {dimension_numbers = #tpu.dot_dimension_numbers<[1], [1], [0], [0], [0, 0, 1, 0], [], []>} : vector<8x8xbf16>, vector<8x8xbf16>, vector<8x8xf32> -> vector<8x8xf32>
    %cst_40 = arith.constant dense<0xFF800000> : vector<8xf32>
    %146 = vector.multi_reduction <maximumf>, %145, %cst_40 [1] : vector<8x8xf32> to vector<8xf32>
    %147 = vector.shape_cast %146 : vector<8xf32> to vector<8x1xf32>
    %148 = vector.broadcast %147 : vector<8x1xf32> to vector<8x8xf32>
    %149 = arith.subf %145, %148 : vector<8x8xf32>
    %150 = math.exp %149 : vector<8x8xf32>
    %cst_41 = arith.constant dense<0.000000e+00> : vector<8xf32>
    %151 = vector.multi_reduction <add>, %150, %cst_41 [1] : vector<8x8xf32> to vector<8xf32>
    %152 = vector.shape_cast %151 : vector<8xf32> to vector<8x1xf32>
    %153 = vector.broadcast %152 : vector<8x1xf32> to vector<8x8xf32>
    %154 = arith.divf %150, %153 : vector<8x8xf32>
    %155 = arith.truncf %154 : vector<8x8xf32> to vector<8x8xbf16>
    %156 = arith.truncf %142 : vector<8x8xf32> to vector<8x8xbf16>
    %cst_42 = arith.constant dense<0.000000e+00> : vector<8x8xf32>
    %157 = tpu.matmul %155, %156, %cst_42 {dimension_numbers = #tpu.dot_dimension_numbers<[1], [0], [0], [1], [0, 0, 1, 1], [], []>} : vector<8x8xbf16>, vector<8x8xbf16>, vector<8x8xf32> -> vector<8x8xf32>
    %158 = arith.truncf %157 : vector<8x8xf32> to vector<8x8xbf16>
    %159 = vector.extract_strided_slice %3 {offsets = [16, 0], sizes = [8, 32], strides = [1, 1]} : vector<32x32xbf16> to vector<8x32xbf16>
    %cst_43 = arith.constant dense<0.000000e+00> : vector<8x32xf32>
    %160 = tpu.matmul %158, %159, %cst_43 {dimension_numbers = #tpu.dot_dimension_numbers<[1], [0], [0], [1], [0, 0, 1, 1], [], []>} : vector<8x8xbf16>, vector<8x32xbf16>, vector<8x32xf32> -> vector<8x32xf32>
    %161 = arith.addf %139, %160 : vector<8x32xf32>
    %162 = vector.extract_strided_slice %96 {offsets = [0, 24], sizes = [8, 8], strides = [1, 1]} : vector<8x96xf32> to vector<8x8xf32>
    %163 = vector.extract_strided_slice %96 {offsets = [0, 56], sizes = [8, 8], strides = [1, 1]} : vector<8x96xf32> to vector<8x8xf32>
    %164 = vector.extract_strided_slice %96 {offsets = [0, 88], sizes = [8, 8], strides = [1, 1]} : vector<8x96xf32> to vector<8x8xf32>
    %165 = arith.truncf %162 : vector<8x8xf32> to vector<8x8xbf16>
    %166 = arith.truncf %163 : vector<8x8xf32> to vector<8x8xbf16>
    %cst_44 = arith.constant dense<0.000000e+00> : vector<8x8xf32>
    %167 = tpu.matmul %165, %166, %cst_44 {dimension_numbers = #tpu.dot_dimension_numbers<[1], [1], [0], [0], [0, 0, 1, 0], [], []>} : vector<8x8xbf16>, vector<8x8xbf16>, vector<8x8xf32> -> vector<8x8xf32>
    %cst_45 = arith.constant dense<0xFF800000> : vector<8xf32>
    %168 = vector.multi_reduction <maximumf>, %167, %cst_45 [1] : vector<8x8xf32> to vector<8xf32>
    %169 = vector.shape_cast %168 : vector<8xf32> to vector<8x1xf32>
    %170 = vector.broadcast %169 : vector<8x1xf32> to vector<8x8xf32>
    %171 = arith.subf %167, %170 : vector<8x8xf32>
    %172 = math.exp %171 : vector<8x8xf32>
    %cst_46 = arith.constant dense<0.000000e+00> : vector<8xf32>
    %173 = vector.multi_reduction <add>, %172, %cst_46 [1] : vector<8x8xf32> to vector<8xf32>
    %174 = vector.shape_cast %173 : vector<8xf32> to vector<8x1xf32>
    %175 = vector.broadcast %174 : vector<8x1xf32> to vector<8x8xf32>
    %176 = arith.divf %172, %175 : vector<8x8xf32>
    %177 = arith.truncf %176 : vector<8x8xf32> to vector<8x8xbf16>
    %178 = arith.truncf %164 : vector<8x8xf32> to vector<8x8xbf16>
    %cst_47 = arith.constant dense<0.000000e+00> : vector<8x8xf32>
    %179 = tpu.matmul %177, %178, %cst_47 {dimension_numbers = #tpu.dot_dimension_numbers<[1], [0], [0], [1], [0, 0, 1, 1], [], []>} : vector<8x8xbf16>, vector<8x8xbf16>, vector<8x8xf32> -> vector<8x8xf32>
    %180 = arith.truncf %179 : vector<8x8xf32> to vector<8x8xbf16>
    %181 = vector.extract_strided_slice %3 {offsets = [24, 0], sizes = [8, 32], strides = [1, 1]} : vector<32x32xbf16> to vector<8x32xbf16>
    %cst_48 = arith.constant dense<0.000000e+00> : vector<8x32xf32>
    %182 = tpu.matmul %180, %181, %cst_48 {dimension_numbers = #tpu.dot_dimension_numbers<[1], [0], [0], [1], [0, 0, 1, 1], [], []>} : vector<8x8xbf16>, vector<8x32xbf16>, vector<8x32xf32> -> vector<8x32xf32>
    %183 = arith.addf %161, %182 : vector<8x32xf32>
    %184 = vector.broadcast %4 : vector<1x32xf32> to vector<8x32xf32>
    %185 = arith.addf %183, %184 : vector<8x32xf32>
    %c8 = arith.constant 8 : index
    %c0_49 = arith.constant 0 : index
    %186 = vector.load %arg5[%c8, %c0_49] : memref<16x32xf32, #tpu.memory_space<vmem>>, vector<8x32xf32>
    tpu.vector_store %arg5[%c8, %c0_49], %185 {strides = array<i32>} : memref<16x32xf32, #tpu.memory_space<vmem>>, vector<8x32xf32>,
    return
  }
  func.func @transform_0(%arg0: i32) -> (i32, i32) {
    %c0_i32 = arith.constant 0 : i32
    %c0_i32_0 = arith.constant 0 : i32
    %c0_i32_1 = arith.constant 0 : i32
    return %c0_i32, %c0_i32_0 : i32, i32
  }
  func.func @transform_1(%arg0: i32) -> (i32, i32) {
    %c0_i32 = arith.constant 0 : i32
    %c0_i32_0 = arith.constant 0 : i32
    %c0_i32_1 = arith.constant 0 : i32
    return %c0_i32, %c0_i32_0 : i32, i32
  }
  func.func @transform_2(%arg0: i32) -> (i32, i32) {
    %c0_i32 = arith.constant 0 : i32
    %c0_i32_0 = arith.constant 0 : i32
    %c0_i32_1 = arith.constant 0 : i32
    return %c0_i32, %c0_i32_0 : i32, i32
  }
  func.func @transform_3(%arg0: i32) -> (i32, i32) {
    %c0_i32 = arith.constant 0 : i32
    %c0_i32_0 = arith.constant 0 : i32
    %c0_i32_1 = arith.constant 0 : i32
    return %c0_i32, %c0_i32_0 : i32, i32
  }
  func.func @transform_4(%arg0: i32) -> (i32, i32) {
    %c0_i32 = arith.constant 0 : i32
    %c0_i32_0 = arith.constant 0 : i32
    %c0_i32_1 = arith.constant 0 : i32
    return %c0_i32, %c0_i32_0 : i32, i32
  }
}

</mosaic_0001>

<llo_original>
// kernel: mha_forward.1
$region0: #{mha_forward.1}
  #allocation0 [shape = 'u32[]', space=smem, size = 0x4, offset = 0x4, fixed_abs, tag = 'smem constant byte address 0x4 - core index']
  #allocation1 [shape = 'u32[144,128]{1,0:T(1,128)}', space=vmem, size = 0x12000, scoped, tag = 'internal scratch']
  %s0 = inlined_call_operand.vmem [shape: bf16[16,32], index: 0, kind: input, shape index: {}]
  %s1 = inlined_call_operand.vmem [shape: bf16[32,96], index: 1, kind: input, shape index: {}]
  %s2 = inlined_call_operand.hbm [shape: bf16[32,32], index: 2, kind: input, shape index: {}]
  %s3 = inlined_call_operand.vmem [shape: f32[1,32], index: 3, kind: input, shape index: {}]
  %s4 = inlined_call_operand.hbm [shape: f32[16,32], index: 4, kind: output, shape index: {}]
  %s5 = sld [smem:[#allocation0]]
  $region30: #{mha_forward.1} parent=0
    _
  %s7 = ssub.s32 1, %s5
  %s8 = scalar_select 0, %s7, %s5
  $region1: #{mha_forward.1} parent=0
    #allocation2 [shape = 'u8[8192]{0}', space=vmem, size = 0x2000, scoped, tag = 'input window, operand 2, single buffered']
    #allocation3 [shape = 's32[1]{0}', space=sflag, size = 0x4, scoped, tag = 'scoped memory for mha_forward.1']
    #allocation4 [shape = 's32[1]{0}', space=sflag, size = 0x4, scoped, tag = 'scoped memory for mha_forward.1']
    #allocation5 [shape = 'u8[8192]{0}', space=vmem, size = 0x2000, scoped, tag = 'output window, operand 0, single buffered']
    %9 = vsyncpa [#allocation3], 0
    %10 = vsyncpa [#allocation4], 0
    // Predicated region
    $region2: #{mha_forward.1} parent=1 // pred_check
      _
    $region3: #{mha_forward.1} parent=1 // pred_check_branch
      %12 = sbr.rel (0) target = $region5
    $region4: #{mha_forward.1} parent=1 // pred_region
      _
    $region5: #{mha_forward.1} parent=1 // pred_fallthru
      _
    // Predicated region
    $region6: #{mha_forward.1} parent=1 // pred_check
      _
    $region7: #{mha_forward.1} parent=1 // pred_check_branch
      %14 = sbr.rel (0) target = $region9
    $region8: #{mha_forward.1} parent=1 // pred_region
      _
    $region9: #{mha_forward.1} parent=1 // pred_fallthru
      _
    // Predicated region
    $region10: #{mha_forward.1} parent=1 // pred_check
      _
    $region11: #{mha_forward.1} parent=1 // pred_check_branch
      %16 = sbr.rel (0) target = $region13
    $region12: #{mha_forward.1} parent=1 // pred_region
      %s18 = ssub.s32 256, 256
      %19 = vsyncadd [#allocation3], %s18
      %s20 = sshll.u32 [#allocation2], 4
      %s21 = int_to_ptr.vmem [resolvable:$true] %s20
      %26 = dma.hbm_to_vmem [thread:$0]  %s2, 256, %s21, [#allocation3], 64, 64, 4
    $region13: #{mha_forward.1} parent=1 // pred_fallthru
      _
    // Predicated region
    $region14: #{mha_forward.1} parent=1 // pred_check
      _
    $region15: #{mha_forward.1} parent=1 // pred_check_branch
      %28 = sbr.rel (0) target = $region17
    $region16: #{mha_forward.1} parent=1 // pred_region
      _
    $region17: #{mha_forward.1} parent=1 // pred_fallthru
      _
    // Predicated region
    $region18: #{mha_forward.1} parent=1 // pred_check
      _
    $region19: #{mha_forward.1} parent=1 // pred_check_branch
      %30 = sbr.rel (0) target = $region21
    $region20: #{mha_forward.1} parent=1 // pred_region
      %31 = dma.done [#allocation3], 256
    $region21: #{mha_forward.1} parent=1 // pred_fallthru
      _
    %v33 = vld [vmem:[%s0] sm:$0xf]
    %v34 = vld [vmem:[%s0 + $0x4] sm:$0xf]
    %v35 = vld [vmem:[%s1] sm:$0xf]
    %v36 = vld [vmem:[%s1 + $0x4] sm:$0xf]
    %v37 = vld [vmem:[%s1 + $0x8] sm:$0xf]
    %v38 = vld [vmem:[%s1 + $0xc] sm:$0xf]
    %v41 = vunpack.c.l.b16 %v33
    %v42 = vunpack.c.l.b16 %v34
    %v43 = vpack.c.b16 %v42, %v41
    %v48 = vunpack.c.l.b16 %v35
    %v49 = vunpack.c.l.b16 %v36
    %v50 = vunpack.c.l.b16 %v37
    %v51 = vunpack.c.l.b16 %v38
    %v52 = vpack.c.b16 %v49, %v48
    %v53 = vpack.c.b16 %v51, %v50
    %vm56 = vcmask 261120
    %v58 = vsel %vm56, %v43, 0
    %60 = vmatprep.subr.bf16.mxu0 0
    %61 = vmatpush1.bf16.msra.mxu0 0
    %62 = vmatprep.subr.bf16.mxu0 0
    %63 = vmatpush1.bf16.msra.mxu0 0
    %64 = vmatprep.subr.bf16.mxu0 0
    %65 = vmatpush1.bf16.msra.mxu0 0
    %66 = vmatprep.subr.bf16.mxu0 0
    %67 = vmatpush1.bf16.msra.mxu0 0
    %68 = vmatprep.subr.bf16.mxu0 0
    %69 = vmatpush1.bf16.msra.mxu0 0
    %70 = vmatprep.subr.bf16.mxu0 0
    %71 = vmatpush1.bf16.msra.mxu0 0
    %72 = vmatprep.subr.bf16.mxu0 0
    %73 = vmatpush1.bf16.msra.mxu0 %v53
    %74 = vmatprep.subr.bf16.mxu0 0
    %75 = vmatpush1.bf16.msra.mxu0 %v52
    %76 = vmatprep.subr.bf16.mxu0 0
    %77 = vmatpush2.bf16.msra.mxu0 0
    %78 = vmatprep.subr.bf16.mxu0 0
    %79 = vmatpush2.bf16.msra.mxu0 0
    %80 = vmatprep.subr.bf16.mxu0 0
    %81 = vmatpush2.bf16.msra.mxu0 0
    %82 = vmatprep.subr.bf16.mxu0 0
    %83 = vmatpush2.bf16.msra.mxu0 0
    %84 = vmatprep.subr.bf16.mxu0 0
    %85 = vmatpush2.bf16.msra.mxu0 0
    %86 = vmatprep.subr.bf16.mxu0 0
    %87 = vmatpush2.bf16.msra.mxu0 0
    %88 = vmatprep.subr.bf16.mxu0 0
    %89 = vmatpush2.bf16.msra.mxu0 0
    %90 = vmatprep.subr.bf16.mxu0 0
    %91 = vmatpush2.bf16.msra.mxu0 0
    %92 = vmatprep.mubr.bf16.mxu0 0
    %93 = vmatmul.mubr.bf16.gmra.mxu0 %v58
    %v94 = vpop.f32.mrf.mxu0
    %v95 = vadd.f32 0.0, %v94
    %v96 = vpop.f32.mrf.mxu0
    %v97 = vpop.f32.mrf.mxu0
    %v98 = vadd.f32 0.0, %v97
    %v99 = vpop.f32.mrf.mxu0
    %100 = vdwg.mxu0
    %v101 = vld [vmem:[#allocation2] sm:$0xf]
    %v102 = vld [vmem:[#allocation2 + $0x4] sm:$0xf]
    %v103 = vld [vmem:[#allocation2 + $0x8] sm:$0xf]
    %v104 = vld [vmem:[#allocation2 + $0xc] sm:$0xf]
    %v105 = vld [vmem:[%s3] sm:$0x1]
    %v106 = vpack.c.bf16 %v95, %v95
    %108 = vrot.lane.b32.xlu0 %v106, 96
    %v109 = vpop.permute.xlu0 %108
    %vm110 = vcmask 64512
    %v112 = vsel %vm110, %v106, 0
    %v115 = vsel %vm110, %v109, 0
    %117 = vmatprep.subr.bf16.mxu0 0
    %118 = vmatpush1.bf16.xpose.msra.mxu0 0
    %119 = vmatprep.subr.bf16.mxu0 0
    %120 = vmatpush1.bf16.xpose.msra.mxu0 0
    %121 = vmatprep.subr.bf16.mxu0 0
    %122 = vmatpush1.bf16.xpose.msra.mxu0 0
    %123 = vmatprep.subr.bf16.mxu0 0
    %124 = vmatpush1.bf16.xpose.msra.mxu0 0
    %125 = vmatprep.subr.bf16.mxu0 0
    %126 = vmatpush1.bf16.xpose.msra.mxu0 0
    %127 = vmatprep.subr.bf16.mxu0 0
    %128 = vmatpush1.bf16.xpose.msra.mxu0 0
    %129 = vmatprep.subr.bf16.mxu0 0
    %130 = vmatpush1.bf16.xpose.msra.mxu0 0
    %131 = vmatprep.subr.bf16.mxu0 0
    %132 = vmatpush1.bf16.xpose.msra.mxu0 %v115
    %133 = vmatprep.subr.bf16.mxu0 0
    %134 = vmatpush2.bf16.xpose.msra.mxu0 0
    %135 = vmatprep.subr.bf16.mxu0 0
    %136 = vmatpush2.bf16.xpose.msra.mxu0 0
    %137 = vmatprep.subr.bf16.mxu0 0
    %138 = vmatpush2.bf16.xpose.msra.mxu0 0
    %139 = vmatprep.subr.bf16.mxu0 0
    %140 = vmatpush2.bf16.xpose.msra.mxu0 0
    %141 = vmatprep.subr.bf16.mxu0 0
    %142 = vmatpush2.bf16.xpose.msra.mxu0 0
    %143 = vmatprep.subr.bf16.mxu0 0
    %144 = vmatpush2.bf16.xpose.msra.mxu0 0
    %145 = vmatprep.subr.bf16.mxu0 0
    %146 = vmatpush2.bf16.xpose.msra.mxu0 0
    %147 = vmatprep.subr.bf16.mxu0 0
    %148 = vmatpush2.bf16.xpose.msra.mxu0 0
    %149 = vmatprep.mubr.bf16.mxu0 0
    %150 = vmatmul.mubr.bf16.gmra.mxu0 %v112
    %v151 = vpop.f32.mrf.mxu0
    %v152 = vadd.f32 0.0, %v151
    %v153 = vpop.f32.mrf.mxu0
    %v154 = vpop.f32.mrf.mxu0
    %v155 = vpop.f32.mrf.mxu0
    %156 = vdwg.mxu0
    %v157 = vsel %vm110, %v152, -inf
    %158 = vmax.xlane.f32.xlu0 %v157
    %v159 = vpop.xlane.xlu0 %158
    %v160 = vsub.f32 %v152, %v159
    %v161 = vmul.f32 %v160, 1.442695
    %v162 = vpow.pop %v161
    %v163 = vsel %vm110, %v162, 0.0
    %164 = vadd.xlane.f32.xlu0 %v163
    %v165 = vpop.xlane.xlu0 %164
    %v166 = vrcp.pop %v165
    %v167 = vmul.f32 %v162, %v166
    %v168 = vpack.c.bf16 %v167, %v167
    %169 = vrot.lane.b32.xlu0 %v106, 64
    %v170 = vpop.permute.xlu0 %169
    %v172 = vsel %vm110, %v168, 0
    %vm174 = vcmask 1043456
    %v176 = vsel %vm174, %v170, 0
    %178 = vmatprep.subr.bf16.mxu0 0
    %179 = vmatpush1.bf16.msra.mxu0 0
    %180 = vmatprep.subr.bf16.mxu0 0
    %181 = vmatpush1.bf16.msra.mxu0 0
    %182 = vmatprep.subr.bf16.mxu0 0
    %183 = vmatpush1.bf16.msra.mxu0 0
    %184 = vmatprep.subr.bf16.mxu0 0
    %185 = vmatpush1.bf16.msra.mxu0 0
    %186 = vmatprep.subr.bf16.mxu0 0
    %187 = vmatpush1.bf16.msra.mxu0 0
    %188 = vmatprep.subr.bf16.mxu0 0
    %189 = vmatpush1.bf16.msra.mxu0 0
    %190 = vmatprep.subr.bf16.mxu0 0
    %191 = vmatpush1.bf16.msra.mxu0 0
    %192 = vmatprep.subr.bf16.mxu0 0
    %193 = vmatpush1.bf16.msra.mxu0 %v176
    %194 = vmatprep.subr.bf16.mxu0 0
    %195 = vmatpush2.bf16.msra.mxu0 0
    %196 = vmatprep.subr.bf16.mxu0 0
    %197 = vmatpush2.bf16.msra.mxu0 0
    %198 = vmatprep.subr.bf16.mxu0 0
    %199 = vmatpush2.bf16.msra.mxu0 0
    %200 = vmatprep.subr.bf16.mxu0 0
    %201 = vmatpush2.bf16.msra.mxu0 0
    %202 = vmatprep.subr.bf16.mxu0 0
    %203 = vmatpush2.bf16.msra.mxu0 0
    %204 = vmatprep.subr.bf16.mxu0 0
    %205 = vmatpush2.bf16.msra.mxu0 0
    %206 = vmatprep.subr.bf16.mxu0 0
    %207 = vmatpush2.bf16.msra.mxu0 0
    %208 = vmatprep.subr.bf16.mxu0 0
    %209 = vmatpush2.bf16.msra.mxu0 0
    %210 = vmatprep.mubr.bf16.mxu0 0
    %211 = vmatmul.mubr.bf16.gmra.mxu0 %v172
    %v212 = vpop.f32.mrf.mxu0
    %v213 = vadd.f32 0.0, %v212
    %v214 = vpop.f32.mrf.mxu0
    %v215 = vpop.f32.mrf.mxu0
    %v216 = vpop.f32.mrf.mxu0
    %217 = vdwg.mxu0
    %v218 = vpack.c.bf16 %v213, %v213
    %219 = vrot.lane.b32.xlu0 %v106, 120
    %v220 = vpop.permute.xlu0 %219
    %221 = vrot.lane.b32.xlu0 %v106, 88
    %v222 = vpop.permute.xlu0 %221
    %v224 = vsel %vm110, %v220, 0
    %v227 = vsel %vm110, %v222, 0
    %229 = vmatprep.subr.bf16.mxu0 0
    %230 = vmatpush1.bf16.xpose.msra.mxu0 0
    %231 = vmatprep.subr.bf16.mxu0 0
    %232 = vmatpush1.bf16.xpose.msra.mxu0 0
    %233 = vmatprep.subr.bf16.mxu0 0
    %234 = vmatpush1.bf16.xpose.msra.mxu0 0
    %235 = vmatprep.subr.bf16.mxu0 0
    %236 = vmatpush1.bf16.xpose.msra.mxu0 0
    %237 = vmatprep.subr.bf16.mxu0 0
    %238 = vmatpush1.bf16.xpose.msra.mxu0 0
    %239 = vmatprep.subr.bf16.mxu0 0
    %240 = vmatpush1.bf16.xpose.msra.mxu0 0
    %241 = vmatprep.subr.bf16.mxu0 0
    %242 = vmatpush1.bf16.xpose.msra.mxu0 0
    %243 = vmatprep.subr.bf16.mxu0 0
    %244 = vmatpush1.bf16.xpose.msra.mxu0 %v227
    %245 = vmatprep.subr.bf16.mxu0 0
    %246 = vmatpush2.bf16.xpose.msra.mxu0 0
    %247 = vmatprep.subr.bf16.mxu0 0
    %248 = vmatpush2.bf16.xpose.msra.mxu0 0
    %249 = vmatprep.subr.bf16.mxu0 0
    %250 = vmatpush2.bf16.xpose.msra.mxu0 0
    %251 = vmatprep.subr.bf16.mxu0 0
    %252 = vmatpush2.bf16.xpose.msra.mxu0 0
    %253 = vmatprep.subr.bf16.mxu0 0
    %254 = vmatpush2.bf16.xpose.msra.mxu0 0
    %255 = vmatprep.subr.bf16.mxu0 0
    %256 = vmatpush2.bf16.xpose.msra.mxu0 0
    %257 = vmatprep.subr.bf16.mxu0 0
    %258 = vmatpush2.bf16.xpose.msra.mxu0 0
    %259 = vmatprep.subr.bf16.mxu0 0
    %260 = vmatpush2.bf16.xpose.msra.mxu0 0
    %261 = vmatprep.mubr.bf16.mxu0 0
    %262 = vmatmul.mubr.bf16.gmra.mxu0 %v224
    %v263 = vpop.f32.mrf.mxu0
    %v264 = vadd.f32 0.0, %v263
    %v265 = vpop.f32.mrf.mxu0
    %v266 = vpop.f32.mrf.mxu0
    %v267 = vpop.f32.mrf.mxu0
    %268 = vdwg.mxu0
    %v269 = vsel %vm110, %v264, -inf
    %270 = vmax.xlane.f32.xlu0 %v269
    %v271 = vpop.xlane.xlu0 %270
    %v272 = vsub.f32 %v264, %v271
    %v273 = vmul.f32 %v272, 1.442695
    %v274 = vpow.pop %v273
    %v275 = vsel %vm110, %v274, 0.0
    %276 = vadd.xlane.f32.xlu0 %v275
    %v277 = vpop.xlane.xlu0 %276
    %v278 = vrcp.pop %v277
    %v279 = vmul.f32 %v274, %v278
    %v280 = vpack.c.bf16 %v279, %v279
    %281 = vrot.lane.b32.xlu0 %v106, 56
    %v282 = vpop.permute.xlu0 %281
    %v284 = vsel %vm110, %v280, 0
    %v287 = vsel %vm174, %v282, 0
    %289 = vmatprep.subr.bf16.mxu0 0
    %290 = vmatpush1.bf16.msra.mxu0 0
    %291 = vmatprep.subr.bf16.mxu0 0
    %292 = vmatpush1.bf16.msra.mxu0 0
    %293 = vmatprep.subr.bf16.mxu0 0
    %294 = vmatpush1.bf16.msra.mxu0 0
    %295 = vmatprep.subr.bf16.mxu0 0
    %296 = vmatpush1.bf16.msra.mxu0 0
    %297 = vmatprep.subr.bf16.mxu0 0
    %298 = vmatpush1.bf16.msra.mxu0 0
    %299 = vmatprep.subr.bf16.mxu0 0
    %300 = vmatpush1.bf16.msra.mxu0 0
    %301 = vmatprep.subr.bf16.mxu0 0
    %302 = vmatpush1.bf16.msra.mxu0 0
    %303 = vmatprep.subr.bf16.mxu0 0
    %304 = vmatpush1.bf16.msra.mxu0 %v287
    %305 = vmatprep.subr.bf16.mxu0 0
    %306 = vmatpush2.bf16.msra.mxu0 0
    %307 = vmatprep.subr.bf16.mxu0 0
    %308 = vmatpush2.bf16.msra.mxu0 0
    %309 = vmatprep.subr.bf16.mxu0 0
    %310 = vmatpush2.bf16.msra.mxu0 0
    %311 = vmatprep.subr.bf16.mxu0 0
    %312 = vmatpush2.bf16.msra.mxu0 0
    %313 = vmatprep.subr.bf16.mxu0 0
    %314 = vmatpush2.bf16.msra.mxu0 0
    %315 = vmatprep.subr.bf16.mxu0 0
    %316 = vmatpush2.bf16.msra.mxu0 0
    %317 = vmatprep.subr.bf16.mxu0 0
    %318 = vmatpush2.bf16.msra.mxu0 0
    %319 = vmatprep.subr.bf16.mxu0 0
    %320 = vmatpush2.bf16.msra.mxu0 0
    %321 = vmatprep.mubr.bf16.mxu0 0
    %322 = vmatmul.mubr.bf16.gmra.mxu0 %v284
    %v323 = vpop.f32.mrf.mxu0
    %v324 = vadd.f32 0.0, %v323
    %v325 = vpop.f32.mrf.mxu0
    %v326 = vpop.f32.mrf.mxu0
    %v327 = vpop.f32.mrf.mxu0
    %328 = vdwg.mxu0
    %v329 = vpack.c.bf16 %v324, %v324
    %v331 = vsel %vm110, %v329, 0
    %v334 = vsel %vm174, %v102, 0
    %336 = vmatprep.subr.bf16.mxu0 0
    %337 = vmatpush1.bf16.msra.mxu0 0
    %338 = vmatprep.subr.bf16.mxu0 0
    %339 = vmatpush1.bf16.msra.mxu0 0
    %340 = vmatprep.subr.bf16.mxu0 0
    %341 = vmatpush1.bf16.msra.mxu0 0
    %342 = vmatprep.subr.bf16.mxu0 0
    %343 = vmatpush1.bf16.msra.mxu0 0
    %344 = vmatprep.subr.bf16.mxu0 0
    %345 = vmatpush1.bf16.msra.mxu0 0
    %346 = vmatprep.subr.bf16.mxu0 0
    %347 = vmatpush1.bf16.msra.mxu0 0
    %348 = vmatprep.subr.bf16.mxu0 0
    %349 = vmatpush1.bf16.msra.mxu0 0
    %350 = vmatprep.subr.bf16.mxu0 0
    %351 = vmatpush1.bf16.msra.mxu0 %v334
    %352 = vmatprep.subr.bf16.mxu0 0
    %353 = vmatpush2.bf16.msra.mxu0 0
    %354 = vmatprep.subr.bf16.mxu0 0
    %355 = vmatpush2.bf16.msra.mxu0 0
    %356 = vmatprep.subr.bf16.mxu0 0
    %357 = vmatpush2.bf16.msra.mxu0 0
    %358 = vmatprep.subr.bf16.mxu0 0
    %359 = vmatpush2.bf16.msra.mxu0 0
    %360 = vmatprep.subr.bf16.mxu0 0
    %361 = vmatpush2.bf16.msra.mxu0 0
    %362 = vmatprep.subr.bf16.mxu0 0
    %363 = vmatpush2.bf16.msra.mxu0 0
    %364 = vmatprep.subr.bf16.mxu0 0
    %365 = vmatpush2.bf16.msra.mxu0 0
    %366 = vmatprep.subr.bf16.mxu0 0
    %367 = vmatpush2.bf16.msra.mxu0 0
    %368 = vmatprep.mubr.bf16.mxu0 0
    %369 = vmatmul.mubr.bf16.gmra.mxu0 %v331
    %v370 = vpop.f32.mrf.mxu0
    %v371 = vadd.f32 0.0, %v370
    %v372 = vpop.f32.mrf.mxu0
    %v373 = vpop.f32.mrf.mxu0
    %v374 = vpop.f32.mrf.mxu0
    %375 = vdwg.mxu0
    %v377 = vsel %vm110, %v218, 0
    %v380 = vsel %vm174, %v101, 0
    %382 = vmatprep.subr.bf16.mxu0 0
    %383 = vmatpush1.bf16.msra.mxu0 0
    %384 = vmatprep.subr.bf16.mxu0 0
    %385 = vmatpush1.bf16.msra.mxu0 0
    %386 = vmatprep.subr.bf16.mxu0 0
    %387 = vmatpush1.bf16.msra.mxu0 0
    %388 = vmatprep.subr.bf16.mxu0 0
    %389 = vmatpush1.bf16.msra.mxu0 0
    %390 = vmatprep.subr.bf16.mxu0 0
    %391 = vmatpush1.bf16.msra.mxu0 0
    %392 = vmatprep.subr.bf16.mxu0 0
    %393 = vmatpush1.bf16.msra.mxu0 0
    %394 = vmatprep.subr.bf16.mxu0 0
    %395 = vmatpush1.bf16.msra.mxu0 0
    %396 = vmatprep.subr.bf16.mxu0 0
    %397 = vmatpush1.bf16.msra.mxu0 %v380
    %398 = vmatprep.subr.bf16.mxu0 0
    %399 = vmatpush2.bf16.msra.mxu0 0
    %400 = vmatprep.subr.bf16.mxu0 0
    %401 = vmatpush2.bf16.msra.mxu0 0
    %402 = vmatprep.subr.bf16.mxu0 0
    %403 = vmatpush2.bf16.msra.mxu0 0
    %404 = vmatprep.subr.bf16.mxu0 0
    %405 = vmatpush2.bf16.msra.mxu0 0
    %406 = vmatprep.subr.bf16.mxu0 0
    %407 = vmatpush2.bf16.msra.mxu0 0
    %408 = vmatprep.subr.bf16.mxu0 0
    %409 = vmatpush2.bf16.msra.mxu0 0
    %410 = vmatprep.subr.bf16.mxu0 0
    %411 = vmatpush2.bf16.msra.mxu0 0
    %412 = vmatprep.subr.bf16.mxu0 0
    %413 = vmatpush2.bf16.msra.mxu0 0
    %414 = vmatprep.mubr.bf16.mxu0 0
    %415 = vmatmul.mubr.bf16.gmra.mxu0 %v377
    %v416 = vpop.f32.mrf.mxu0
    %v417 = vadd.f32 %v371, %v416
    %v418 = vpop.f32.mrf.mxu0
    %v419 = vpop.f32.mrf.mxu0
    %v420 = vpop.f32.mrf.mxu0
    %421 = vdwg.mxu0
    %422 = vrot.lane.b32.xlu0 %v106, 112
    %v423 = vpop.permute.xlu0 %422
    %424 = vrot.lane.b32.xlu0 %v106, 80
    %v425 = vpop.permute.xlu0 %424
    %v427 = vsel %vm110, %v423, 0
    %v430 = vsel %vm110, %v425, 0
    %432 = vmatprep.subr.bf16.mxu0 0
    %433 = vmatpush1.bf16.xpose.msra.mxu0 0
    %434 = vmatprep.subr.bf16.mxu0 0
    %435 = vmatpush1.bf16.xpose.msra.mxu0 0
    %436 = vmatprep.subr.bf16.mxu0 0
    %437 = vmatpush1.bf16.xpose.msra.mxu0 0
    %438 = vmatprep.subr.bf16.mxu0 0
    %439 = vmatpush1.bf16.xpose.msra.mxu0 0
    %440 = vmatprep.subr.bf16.mxu0 0
    %441 = vmatpush1.bf16.xpose.msra.mxu0 0
    %442 = vmatprep.subr.bf16.mxu0 0
    %443 = vmatpush1.bf16.xpose.msra.mxu0 0
    %444 = vmatprep.subr.bf16.mxu0 0
    %445 = vmatpush1.bf16.xpose.msra.mxu0 0
    %446 = vmatprep.subr.bf16.mxu0 0
    %447 = vmatpush1.bf16.xpose.msra.mxu0 %v430
    %448 = vmatprep.subr.bf16.mxu0 0
    %449 = vmatpush2.bf16.xpose.msra.mxu0 0
    %450 = vmatprep.subr.bf16.mxu0 0
    %451 = vmatpush2.bf16.xpose.msra.mxu0 0
    %452 = vmatprep.subr.bf16.mxu0 0
    %453 = vmatpush2.bf16.xpose.msra.mxu0 0
    %454 = vmatprep.subr.bf16.mxu0 0
    %455 = vmatpush2.bf16.xpose.msra.mxu0 0
    %456 = vmatprep.subr.bf16.mxu0 0
    %457 = vmatpush2.bf16.xpose.msra.mxu0 0
    %458 = vmatprep.subr.bf16.mxu0 0
    %459 = vmatpush2.bf16.xpose.msra.mxu0 0
    %460 = vmatprep.subr.bf16.mxu0 0
    %461 = vmatpush2.bf16.xpose.msra.mxu0 0
    %462 = vmatprep.subr.bf16.mxu0 0
    %463 = vmatpush2.bf16.xpose.msra.mxu0 0
    %464 = vmatprep.mubr.bf16.mxu0 0
    %465 = vmatmul.mubr.bf16.gmra.mxu0 %v427
    %v466 = vpop.f32.mrf.mxu0
    %v467 = vadd.f32 0.0, %v466
    %v468 = vpop.f32.mrf.mxu0
    %v469 = vpop.f32.mrf.mxu0
    %v470 = vpop.f32.mrf.mxu0
    %471 = vdwg.mxu0
    %v472 = vsel %vm110, %v467, -inf
    %473 = vmax.xlane.f32.xlu0 %v472
    %v474 = vpop.xlane.xlu0 %473
    %v475 = vsub.f32 %v467, %v474
    %v476 = vmul.f32 %v475, 1.442695
    %v477 = vpow.pop %v476
    %v478 = vsel %vm110, %v477, 0.0
    %479 = vadd.xlane.f32.xlu0 %v478
    %v480 = vpop.xlane.xlu0 %479
    %v481 = vrcp.pop %v480
    %v482 = vmul.f32 %v477, %v481
    %v483 = vpack.c.bf16 %v482, %v482
    %484 = vrot.lane.b32.xlu0 %v106, 48
    %v485 = vpop.permute.xlu0 %484
    %v487 = vsel %vm110, %v483, 0
    %v490 = vsel %vm174, %v485, 0
    %492 = vmatprep.subr.bf16.mxu0 0
    %493 = vmatpush1.bf16.msra.mxu0 0
    %494 = vmatprep.subr.bf16.mxu0 0
    %495 = vmatpush1.bf16.msra.mxu0 0
    %496 = vmatprep.subr.bf16.mxu0 0
    %497 = vmatpush1.bf16.msra.mxu0 0
    %498 = vmatprep.subr.bf16.mxu0 0
    %499 = vmatpush1.bf16.msra.mxu0 0
    %500 = vmatprep.subr.bf16.mxu0 0
    %501 = vmatpush1.bf16.msra.mxu0 0
    %502 = vmatprep.subr.bf16.mxu0 0
    %503 = vmatpush1.bf16.msra.mxu0 0
    %504 = vmatprep.subr.bf16.mxu0 0
    %505 = vmatpush1.bf16.msra.mxu0 0
    %506 = vmatprep.subr.bf16.mxu0 0
    %507 = vmatpush1.bf16.msra.mxu0 %v490
    %508 = vmatprep.subr.bf16.mxu0 0
    %509 = vmatpush2.bf16.msra.mxu0 0
    %510 = vmatprep.subr.bf16.mxu0 0
    %511 = vmatpush2.bf16.msra.mxu0 0
    %512 = vmatprep.subr.bf16.mxu0 0
    %513 = vmatpush2.bf16.msra.mxu0 0
    %514 = vmatprep.subr.bf16.mxu0 0
    %515 = vmatpush2.bf16.msra.mxu0 0
    %516 = vmatprep.subr.bf16.mxu0 0
    %517 = vmatpush2.bf16.msra.mxu0 0
    %518 = vmatprep.subr.bf16.mxu0 0
    %519 = vmatpush2.bf16.msra.mxu0 0
    %520 = vmatprep.subr.bf16.mxu0 0
    %521 = vmatpush2.bf16.msra.mxu0 0
    %522 = vmatprep.subr.bf16.mxu0 0
    %523 = vmatpush2.bf16.msra.mxu0 0
    %524 = vmatprep.mubr.bf16.mxu0 0
    %525 = vmatmul.mubr.bf16.gmra.mxu0 %v487
    %v526 = vpop.f32.mrf.mxu0
    %v527 = vadd.f32 0.0, %v526
    %v528 = vpop.f32.mrf.mxu0
    %v529 = vpop.f32.mrf.mxu0
    %v530 = vpop.f32.mrf.mxu0
    %531 = vdwg.mxu0
    %v532 = vpack.c.bf16 %v527, %v527
    %v534 = vsel %vm110, %v532, 0
    %v537 = vsel %vm174, %v103, 0
    %539 = vmatprep.subr.bf16.mxu0 0
    %540 = vmatpush1.bf16.msra.mxu0 0
    %541 = vmatprep.subr.bf16.mxu0 0
    %542 = vmatpush1.bf16.msra.mxu0 0
    %543 = vmatprep.subr.bf16.mxu0 0
    %544 = vmatpush1.bf16.msra.mxu0 0
    %545 = vmatprep.subr.bf16.mxu0 0
    %546 = vmatpush1.bf16.msra.mxu0 0
    %547 = vmatprep.subr.bf16.mxu0 0
    %548 = vmatpush1.bf16.msra.mxu0 0
    %549 = vmatprep.subr.bf16.mxu0 0
    %550 = vmatpush1.bf16.msra.mxu0 0
    %551 = vmatprep.subr.bf16.mxu0 0
    %552 = vmatpush1.bf16.msra.mxu0 0
    %553 = vmatprep.subr.bf16.mxu0 0
    %554 = vmatpush1.bf16.msra.mxu0 %v537
    %555 = vmatprep.subr.bf16.mxu0 0
    %556 = vmatpush2.bf16.msra.mxu0 0
    %557 = vmatprep.subr.bf16.mxu0 0
    %558 = vmatpush2.bf16.msra.mxu0 0
    %559 = vmatprep.subr.bf16.mxu0 0
    %560 = vmatpush2.bf16.msra.mxu0 0
    %561 = vmatprep.subr.bf16.mxu0 0
    %562 = vmatpush2.bf16.msra.mxu0 0
    %563 = vmatprep.subr.bf16.mxu0 0
    %564 = vmatpush2.bf16.msra.mxu0 0
    %565 = vmatprep.subr.bf16.mxu0 0
    %566 = vmatpush2.bf16.msra.mxu0 0
    %567 = vmatprep.subr.bf16.mxu0 0
    %568 = vmatpush2.bf16.msra.mxu0 0
    %569 = vmatprep.subr.bf16.mxu0 0
    %570 = vmatpush2.bf16.msra.mxu0 0
    %571 = vmatprep.mubr.bf16.mxu0 0
    %572 = vmatmul.mubr.bf16.gmra.mxu0 %v534
    %v573 = vpop.f32.mrf.mxu0
    %v574 = vadd.f32 0.0, %v573
    %v575 = vpop.f32.mrf.mxu0
    %v576 = vpop.f32.mrf.mxu0
    %v577 = vpop.f32.mrf.mxu0
    %578 = vdwg.mxu0
    %v579 = vadd.f32 %v417, %v574
    %580 = vrot.lane.b32.xlu0 %v106, 104
    %v581 = vpop.permute.xlu0 %580
    %582 = vrot.lane.b32.xlu0 %v106, 72
    %v583 = vpop.permute.xlu0 %582
    %v585 = vsel %vm110, %v581, 0
    %v588 = vsel %vm110, %v583, 0
    %590 = vmatprep.subr.bf16.mxu0 0
    %591 = vmatpush1.bf16.xpose.msra.mxu0 0
    %592 = vmatprep.subr.bf16.mxu0 0
    %593 = vmatpush1.bf16.xpose.msra.mxu0 0
    %594 = vmatprep.subr.bf16.mxu0 0
    %595 = vmatpush1.bf16.xpose.msra.mxu0 0
    %596 = vmatprep.subr.bf16.mxu0 0
    %597 = vmatpush1.bf16.xpose.msra.mxu0 0
    %598 = vmatprep.subr.bf16.mxu0 0
    %599 = vmatpush1.bf16.xpose.msra.mxu0 0
    %600 = vmatprep.subr.bf16.mxu0 0
    %601 = vmatpush1.bf16.xpose.msra.mxu0 0
    %602 = vmatprep.subr.bf16.mxu0 0
    %603 = vmatpush1.bf16.xpose.msra.mxu0 0
    %604 = vmatprep.subr.bf16.mxu0 0
    %605 = vmatpush1.bf16.xpose.msra.mxu0 %v588
    %606 = vmatprep.subr.bf16.mxu0 0
    %607 = vmatpush2.bf16.xpose.msra.mxu0 0
    %608 = vmatprep.subr.bf16.mxu0 0
    %609 = vmatpush2.bf16.xpose.msra.mxu0 0
    %610 = vmatprep.subr.bf16.mxu0 0
    %611 = vmatpush2.bf16.xpose.msra.mxu0 0
    %612 = vmatprep.subr.bf16.mxu0 0
    %613 = vmatpush2.bf16.xpose.msra.mxu0 0
    %614 = vmatprep.subr.bf16.mxu0 0
    %615 = vmatpush2.bf16.xpose.msra.mxu0 0
    %616 = vmatprep.subr.bf16.mxu0 0
    %617 = vmatpush2.bf16.xpose.msra.mxu0 0
    %618 = vmatprep.subr.bf16.mxu0 0
    %619 = vmatpush2.bf16.xpose.msra.mxu0 0
    %620 = vmatprep.subr.bf16.mxu0 0
    %621 = vmatpush2.bf16.xpose.msra.mxu0 0
    %622 = vmatprep.mubr.bf16.mxu0 0
    %623 = vmatmul.mubr.bf16.gmra.mxu0 %v585
    %v624 = vpop.f32.mrf.mxu0
    %v625 = vadd.f32 0.0, %v624
    %v626 = vpop.f32.mrf.mxu0
    %v627 = vpop.f32.mrf.mxu0
    %v628 = vpop.f32.mrf.mxu0
    %629 = vdwg.mxu0
    %v630 = vsel %vm110, %v625, -inf
    %631 = vmax.xlane.f32.xlu0 %v630
    %v632 = vpop.xlane.xlu0 %631
    %v633 = vsub.f32 %v625, %v632
    %v634 = vmul.f32 %v633, 1.442695
    %v635 = vpow.pop %v634
    %v636 = vsel %vm110, %v635, 0.0
    %637 = vadd.xlane.f32.xlu0 %v636
    %v638 = vpop.xlane.xlu0 %637
    %v639 = vrcp.pop %v638
    %v640 = vmul.f32 %v635, %v639
    %v641 = vpack.c.bf16 %v640, %v640
    %642 = vrot.lane.b32.xlu0 %v106, 40
    %v643 = vpop.permute.xlu0 %642
    %v645 = vsel %vm110, %v641, 0
    %v648 = vsel %vm174, %v643, 0
    %650 = vmatprep.subr.bf16.mxu0 0
    %651 = vmatpush1.bf16.msra.mxu0 0
    %652 = vmatprep.subr.bf16.mxu0 0
    %653 = vmatpush1.bf16.msra.mxu0 0
    %654 = vmatprep.subr.bf16.mxu0 0
    %655 = vmatpush1.bf16.msra.mxu0 0
    %656 = vmatprep.subr.bf16.mxu0 0
    %657 = vmatpush1.bf16.msra.mxu0 0
    %658 = vmatprep.subr.bf16.mxu0 0
    %659 = vmatpush1.bf16.msra.mxu0 0
    %660 = vmatprep.subr.bf16.mxu0 0
    %661 = vmatpush1.bf16.msra.mxu0 0
    %662 = vmatprep.subr.bf16.mxu0 0
    %663 = vmatpush1.bf16.msra.mxu0 0
    %664 = vmatprep.subr.bf16.mxu0 0
    %665 = vmatpush1.bf16.msra.mxu0 %v648
    %666 = vmatprep.subr.bf16.mxu0 0
    %667 = vmatpush2.bf16.msra.mxu0 0
    %668 = vmatprep.subr.bf16.mxu0 0
    %669 = vmatpush2.bf16.msra.mxu0 0
    %670 = vmatprep.subr.bf16.mxu0 0
    %671 = vmatpush2.bf16.msra.mxu0 0
    %672 = vmatprep.subr.bf16.mxu0 0
    %673 = vmatpush2.bf16.msra.mxu0 0
    %674 = vmatprep.subr.bf16.mxu0 0
    %675 = vmatpush2.bf16.msra.mxu0 0
    %676 = vmatprep.subr.bf16.mxu0 0
    %677 = vmatpush2.bf16.msra.mxu0 0
    %678 = vmatprep.subr.bf16.mxu0 0
    %679 = vmatpush2.bf16.msra.mxu0 0
    %680 = vmatprep.subr.bf16.mxu0 0
    %681 = vmatpush2.bf16.msra.mxu0 0
    %682 = vmatprep.mubr.bf16.mxu0 0
    %683 = vmatmul.mubr.bf16.gmra.mxu0 %v645
    %v684 = vpop.f32.mrf.mxu0
    %v685 = vadd.f32 0.0, %v684
    %v686 = vpop.f32.mrf.mxu0
    %v687 = vpop.f32.mrf.mxu0
    %v688 = vpop.f32.mrf.mxu0
    %689 = vdwg.mxu0
    %v690 = vpack.c.bf16 %v685, %v685
    %v692 = vsel %vm110, %v690, 0
    %v695 = vsel %vm174, %v104, 0
    %697 = vmatprep.subr.bf16.mxu0 0
    %698 = vmatpush1.bf16.msra.mxu0 0
    %699 = vmatprep.subr.bf16.mxu0 0
    %700 = vmatpush1.bf16.msra.mxu0 0
    %701 = vmatprep.subr.bf16.mxu0 0
    %702 = vmatpush1.bf16.msra.mxu0 0
    %703 = vmatprep.subr.bf16.mxu0 0
    %704 = vmatpush1.bf16.msra.mxu0 0
    %705 = vmatprep.subr.bf16.mxu0 0
    %706 = vmatpush1.bf16.msra.mxu0 0
    %707 = vmatprep.subr.bf16.mxu0 0
    %708 = vmatpush1.bf16.msra.mxu0 0
    %709 = vmatprep.subr.bf16.mxu0 0
    %710 = vmatpush1.bf16.msra.mxu0 0
    %711 = vmatprep.subr.bf16.mxu0 0
    %712 = vmatpush1.bf16.msra.mxu0 %v695
    %713 = vmatprep.subr.bf16.mxu0 0
    %714 = vmatpush2.bf16.msra.mxu0 0
    %715 = vmatprep.subr.bf16.mxu0 0
    %716 = vmatpush2.bf16.msra.mxu0 0
    %717 = vmatprep.subr.bf16.mxu0 0
    %718 = vmatpush2.bf16.msra.mxu0 0
    %719 = vmatprep.subr.bf16.mxu0 0
    %720 = vmatpush2.bf16.msra.mxu0 0
    %721 = vmatprep.subr.bf16.mxu0 0
    %722 = vmatpush2.bf16.msra.mxu0 0
    %723 = vmatprep.subr.bf16.mxu0 0
    %724 = vmatpush2.bf16.msra.mxu0 0
    %725 = vmatprep.subr.bf16.mxu0 0
    %726 = vmatpush2.bf16.msra.mxu0 0
    %727 = vmatprep.subr.bf16.mxu0 0
    %728 = vmatpush2.bf16.msra.mxu0 0
    %729 = vmatprep.mubr.bf16.mxu0 0
    %730 = vmatmul.mubr.bf16.gmra.mxu0 %v692
    %v731 = vpop.f32.mrf.mxu0
    %v732 = vadd.f32 0.0, %v731
    %v733 = vpop.f32.mrf.mxu0
    %v734 = vpop.f32.mrf.mxu0
    %v735 = vpop.f32.mrf.mxu0
    %736 = vdwg.mxu0
    %v737 = vadd.f32 %v579, %v732
    %v739 = vlaneseq
    %v740 = vshrl.u32 %v739, 7
    %v741 = vsub.s32 0, %v740
    %v742 = vrot.slane %v105, %v741
    %v744 = vadd.f32 %v737, %v742
    %745 = vst.msk [vmem:[#allocation5] sm:$0xff] %vm56, %v744
    %v746 = vpack.c.bf16 %v98, %v98
    %748 = vrot.lane.b32.xlu0 %v746, 96
    %v749 = vpop.permute.xlu0 %748
    %v751 = vsel %vm110, %v746, 0
    %v754 = vsel %vm110, %v749, 0
    %756 = vmatprep.subr.bf16.mxu0 0
    %757 = vmatpush1.bf16.xpose.msra.mxu0 0
    %758 = vmatprep.subr.bf16.mxu0 0
    %759 = vmatpush1.bf16.xpose.msra.mxu0 0
    %760 = vmatprep.subr.bf16.mxu0 0
    %761 = vmatpush1.bf16.xpose.msra.mxu0 0
    %762 = vmatprep.subr.bf16.mxu0 0
    %763 = vmatpush1.bf16.xpose.msra.mxu0 0
    %764 = vmatprep.subr.bf16.mxu0 0
    %765 = vmatpush1.bf16.xpose.msra.mxu0 0
    %766 = vmatprep.subr.bf16.mxu0 0
    %767 = vmatpush1.bf16.xpose.msra.mxu0 0
    %768 = vmatprep.subr.bf16.mxu0 0
    %769 = vmatpush1.bf16.xpose.msra.mxu0 0
    %770 = vmatprep.subr.bf16.mxu0 0
    %771 = vmatpush1.bf16.xpose.msra.mxu0 %v754
    %772 = vmatprep.subr.bf16.mxu0 0
    %773 = vmatpush2.bf16.xpose.msra.mxu0 0
    %774 = vmatprep.subr.bf16.mxu0 0
    %775 = vmatpush2.bf16.xpose.msra.mxu0 0
    %776 = vmatprep.subr.bf16.mxu0 0
    %777 = vmatpush2.bf16.xpose.msra.mxu0 0
    %778 = vmatprep.subr.bf16.mxu0 0
    %779 = vmatpush2.bf16.xpose.msra.mxu0 0
    %780 = vmatprep.subr.bf16.mxu0 0
    %781 = vmatpush2.bf16.xpose.msra.mxu0 0
    %782 = vmatprep.subr.bf16.mxu0 0
    %783 = vmatpush2.bf16.xpose.msra.mxu0 0
    %784 = vmatprep.subr.bf16.mxu0 0
    %785 = vmatpush2.bf16.xpose.msra.mxu0 0
    %786 = vmatprep.subr.bf16.mxu0 0
    %787 = vmatpush2.bf16.xpose.msra.mxu0 0
    %788 = vmatprep.mubr.bf16.mxu0 0
    %789 = vmatmul.mubr.bf16.gmra.mxu0 %v751
    %v790 = vpop.f32.mrf.mxu0
    %v791 = vadd.f32 0.0, %v790
    %v792 = vpop.f32.mrf.mxu0
    %v793 = vpop.f32.mrf.mxu0
    %v794 = vpop.f32.mrf.mxu0
    %795 = vdwg.mxu0
    %v796 = vsel %vm110, %v791, -inf
    %797 = vmax.xlane.f32.xlu0 %v796
    %v798 = vpop.xlane.xlu0 %797
    %v799 = vsub.f32 %v791, %v798
    %v800 = vmul.f32 %v799, 1.442695
    %v801 = vpow.pop %v800
    %v802 = vsel %vm110, %v801, 0.0
    %803 = vadd.xlane.f32.xlu0 %v802
    %v804 = vpop.xlane.xlu0 %803
    %v805 = vrcp.pop %v804
    %v806 = vmul.f32 %v801, %v805
    %v807 = vpack.c.bf16 %v806, %v806
    %808 = vrot.lane.b32.xlu0 %v746, 64
    %v809 = vpop.permute.xlu0 %808
    %v811 = vsel %vm110, %v807, 0
    %v814 = vsel %vm174, %v809, 0
    %816 = vmatprep.subr.bf16.mxu0 0
    %817 = vmatpush1.bf16.msra.mxu0 0
    %818 = vmatprep.subr.bf16.mxu0 0
    %819 = vmatpush1.bf16.msra.mxu0 0
    %820 = vmatprep.subr.bf16.mxu0 0
    %821 = vmatpush1.bf16.msra.mxu0 0
    %822 = vmatprep.subr.bf16.mxu0 0
    %823 = vmatpush1.bf16.msra.mxu0 0
    %824 = vmatprep.subr.bf16.mxu0 0
    %825 = vmatpush1.bf16.msra.mxu0 0
    %826 = vmatprep.subr.bf16.mxu0 0
    %827 = vmatpush1.bf16.msra.mxu0 0
    %828 = vmatprep.subr.bf16.mxu0 0
    %829 = vmatpush1.bf16.msra.mxu0 0
    %830 = vmatprep.subr.bf16.mxu0 0
    %831 = vmatpush1.bf16.msra.mxu0 %v814
    %832 = vmatprep.subr.bf16.mxu0 0
    %833 = vmatpush2.bf16.msra.mxu0 0
    %834 = vmatprep.subr.bf16.mxu0 0
    %835 = vmatpush2.bf16.msra.mxu0 0
    %836 = vmatprep.subr.bf16.mxu0 0
    %837 = vmatpush2.bf16.msra.mxu0 0
    %838 = vmatprep.subr.bf16.mxu0 0
    %839 = vmatpush2.bf16.msra.mxu0 0
    %840 = vmatprep.subr.bf16.mxu0 0
    %841 = vmatpush2.bf16.msra.mxu0 0
    %842 = vmatprep.subr.bf16.mxu0 0
    %843 = vmatpush2.bf16.msra.mxu0 0
    %844 = vmatprep.subr.bf16.mxu0 0
    %845 = vmatpush2.bf16.msra.mxu0 0
    %846 = vmatprep.subr.bf16.mxu0 0
    %847 = vmatpush2.bf16.msra.mxu0 0
    %848 = vmatprep.mubr.bf16.mxu0 0
    %849 = vmatmul.mubr.bf16.gmra.mxu0 %v811
    %v850 = vpop.f32.mrf.mxu0
    %v851 = vadd.f32 0.0, %v850
    %v852 = vpop.f32.mrf.mxu0
    %v853 = vpop.f32.mrf.mxu0
    %v854 = vpop.f32.mrf.mxu0
    %855 = vdwg.mxu0
    %v856 = vpack.c.bf16 %v851, %v851
    %857 = vrot.lane.b32.xlu0 %v746, 120
    %v858 = vpop.permute.xlu0 %857
    %859 = vrot.lane.b32.xlu0 %v746, 88
    %v860 = vpop.permute.xlu0 %859
    %v862 = vsel %vm110, %v858, 0
    %v865 = vsel %vm110, %v860, 0
    %867 = vmatprep.subr.bf16.mxu0 0
    %868 = vmatpush1.bf16.xpose.msra.mxu0 0
    %869 = vmatprep.subr.bf16.mxu0 0
    %870 = vmatpush1.bf16.xpose.msra.mxu0 0
    %871 = vmatprep.subr.bf16.mxu0 0
    %872 = vmatpush1.bf16.xpose.msra.mxu0 0
    %873 = vmatprep.subr.bf16.mxu0 0
    %874 = vmatpush1.bf16.xpose.msra.mxu0 0
    %875 = vmatprep.subr.bf16.mxu0 0
    %876 = vmatpush1.bf16.xpose.msra.mxu0 0
    %877 = vmatprep.subr.bf16.mxu0 0
    %878 = vmatpush1.bf16.xpose.msra.mxu0 0
    %879 = vmatprep.subr.bf16.mxu0 0
    %880 = vmatpush1.bf16.xpose.msra.mxu0 0
    %881 = vmatprep.subr.bf16.mxu0 0
    %882 = vmatpush1.bf16.xpose.msra.mxu0 %v865
    %883 = vmatprep.subr.bf16.mxu0 0
    %884 = vmatpush2.bf16.xpose.msra.mxu0 0
    %885 = vmatprep.subr.bf16.mxu0 0
    %886 = vmatpush2.bf16.xpose.msra.mxu0 0
    %887 = vmatprep.subr.bf16.mxu0 0
    %888 = vmatpush2.bf16.xpose.msra.mxu0 0
    %889 = vmatprep.subr.bf16.mxu0 0
    %890 = vmatpush2.bf16.xpose.msra.mxu0 0
    %891 = vmatprep.subr.bf16.mxu0 0
    %892 = vmatpush2.bf16.xpose.msra.mxu0 0
    %893 = vmatprep.subr.bf16.mxu0 0
    %894 = vmatpush2.bf16.xpose.msra.mxu0 0
    %895 = vmatprep.subr.bf16.mxu0 0
    %896 = vmatpush2.bf16.xpose.msra.mxu0 0
    %897 = vmatprep.subr.bf16.mxu0 0
    %898 = vmatpush2.bf16.xpose.msra.mxu0 0
    %899 = vmatprep.mubr.bf16.mxu0 0
    %900 = vmatmul.mubr.bf16.gmra.mxu0 %v862
    %v901 = vpop.f32.mrf.mxu0
    %v902 = vadd.f32 0.0, %v901
    %v903 = vpop.f32.mrf.mxu0
    %v904 = vpop.f32.mrf.mxu0
    %v905 = vpop.f32.mrf.mxu0
    %906 = vdwg.mxu0
    %v907 = vsel %vm110, %v902, -inf
    %908 = vmax.xlane.f32.xlu0 %v907
    %v909 = vpop.xlane.xlu0 %908
    %v910 = vsub.f32 %v902, %v909
    %v911 = vmul.f32 %v910, 1.442695
    %v912 = vpow.pop %v911
    %v913 = vsel %vm110, %v912, 0.0
    %914 = vadd.xlane.f32.xlu0 %v913
    %v915 = vpop.xlane.xlu0 %914
    %v916 = vrcp.pop %v915
    %v917 = vmul.f32 %v912, %v916
    %v918 = vpack.c.bf16 %v917, %v917
    %919 = vrot.lane.b32.xlu0 %v746, 56
    %v920 = vpop.permute.xlu0 %919
    %v922 = vsel %vm110, %v918, 0
    %v925 = vsel %vm174, %v920, 0
    %927 = vmatprep.subr.bf16.mxu0 0
    %928 = vmatpush1.bf16.msra.mxu0 0
    %929 = vmatprep.subr.bf16.mxu0 0
    %930 = vmatpush1.bf16.msra.mxu0 0
    %931 = vmatprep.subr.bf16.mxu0 0
    %932 = vmatpush1.bf16.msra.mxu0 0
    %933 = vmatprep.subr.bf16.mxu0 0
    %934 = vmatpush1.bf16.msra.mxu0 0
    %935 = vmatprep.subr.bf16.mxu0 0
    %936 = vmatpush1.bf16.msra.mxu0 0
    %937 = vmatprep.subr.bf16.mxu0 0
    %938 = vmatpush1.bf16.msra.mxu0 0
    %939 = vmatprep.subr.bf16.mxu0 0
    %940 = vmatpush1.bf16.msra.mxu0 0
    %941 = vmatprep.subr.bf16.mxu0 0
    %942 = vmatpush1.bf16.msra.mxu0 %v925
    %943 = vmatprep.subr.bf16.mxu0 0
    %944 = vmatpush2.bf16.msra.mxu0 0
    %945 = vmatprep.subr.bf16.mxu0 0
    %946 = vmatpush2.bf16.msra.mxu0 0
    %947 = vmatprep.subr.bf16.mxu0 0
    %948 = vmatpush2.bf16.msra.mxu0 0
    %949 = vmatprep.subr.bf16.mxu0 0
    %950 = vmatpush2.bf16.msra.mxu0 0
    %951 = vmatprep.subr.bf16.mxu0 0
    %952 = vmatpush2.bf16.msra.mxu0 0
    %953 = vmatprep.subr.bf16.mxu0 0
    %954 = vmatpush2.bf16.msra.mxu0 0
    %955 = vmatprep.subr.bf16.mxu0 0
    %956 = vmatpush2.bf16.msra.mxu0 0
    %957 = vmatprep.subr.bf16.mxu0 0
    %958 = vmatpush2.bf16.msra.mxu0 0
    %959 = vmatprep.mubr.bf16.mxu0 0
    %960 = vmatmul.mubr.bf16.gmra.mxu0 %v922
    %v961 = vpop.f32.mrf.mxu0
    %v962 = vadd.f32 0.0, %v961
    %v963 = vpop.f32.mrf.mxu0
    %v964 = vpop.f32.mrf.mxu0
    %v965 = vpop.f32.mrf.mxu0
    %966 = vdwg.mxu0
    %v967 = vpack.c.bf16 %v962, %v962
    %v969 = vsel %vm110, %v967, 0
    %971 = vmatprep.subr.bf16.mxu0 0
    %972 = vmatpush1.bf16.msra.mxu0 0
    %973 = vmatprep.subr.bf16.mxu0 0
    %974 = vmatpush1.bf16.msra.mxu0 0
    %975 = vmatprep.subr.bf16.mxu0 0
    %976 = vmatpush1.bf16.msra.mxu0 0
    %977 = vmatprep.subr.bf16.mxu0 0
    %978 = vmatpush1.bf16.msra.mxu0 0
    %979 = vmatprep.subr.bf16.mxu0 0
    %980 = vmatpush1.bf16.msra.mxu0 0
    %981 = vmatprep.subr.bf16.mxu0 0
    %982 = vmatpush1.bf16.msra.mxu0 0
    %983 = vmatprep.subr.bf16.mxu0 0
    %984 = vmatpush1.bf16.msra.mxu0 0
    %985 = vmatprep.subr.bf16.mxu0 0
    %986 = vmatpush1.bf16.msra.mxu0 %v334
    %987 = vmatprep.subr.bf16.mxu0 0
    %988 = vmatpush2.bf16.msra.mxu0 0
    %989 = vmatprep.subr.bf16.mxu0 0
    %990 = vmatpush2.bf16.msra.mxu0 0
    %991 = vmatprep.subr.bf16.mxu0 0
    %992 = vmatpush2.bf16.msra.mxu0 0
    %993 = vmatprep.subr.bf16.mxu0 0
    %994 = vmatpush2.bf16.msra.mxu0 0
    %995 = vmatprep.subr.bf16.mxu0 0
    %996 = vmatpush2.bf16.msra.mxu0 0
    %997 = vmatprep.subr.bf16.mxu0 0
    %998 = vmatpush2.bf16.msra.mxu0 0
    %999 = vmatprep.subr.bf16.mxu0 0
    %1000 = vmatpush2.bf16.msra.mxu0 0
    %1001 = vmatprep.subr.bf16.mxu0 0
    %1002 = vmatpush2.bf16.msra.mxu0 0
    %1003 = vmatprep.mubr.bf16.mxu0 0
    %1004 = vmatmul.mubr.bf16.gmra.mxu0 %v969
    %v1005 = vpop.f32.mrf.mxu0
    %v1006 = vadd.f32 0.0, %v1005
    %v1007 = vpop.f32.mrf.mxu0
    %v1008 = vpop.f32.mrf.mxu0
    %v1009 = vpop.f32.mrf.mxu0
    %1010 = vdwg.mxu0
    %v1012 = vsel %vm110, %v856, 0
    %1014 = vmatprep.subr.bf16.mxu0 0
    %1015 = vmatpush1.bf16.msra.mxu0 0
    %1016 = vmatprep.subr.bf16.mxu0 0
    %1017 = vmatpush1.bf16.msra.mxu0 0
    %1018 = vmatprep.subr.bf16.mxu0 0
    %1019 = vmatpush1.bf16.msra.mxu0 0
    %1020 = vmatprep.subr.bf16.mxu0 0
    %1021 = vmatpush1.bf16.msra.mxu0 0
    %1022 = vmatprep.subr.bf16.mxu0 0
    %1023 = vmatpush1.bf16.msra.mxu0 0
    %1024 = vmatprep.subr.bf16.mxu0 0
    %1025 = vmatpush1.bf16.msra.mxu0 0
    %1026 = vmatprep.subr.bf16.mxu0 0
    %1027 = vmatpush1.bf16.msra.mxu0 0
    %1028 = vmatprep.subr.bf16.mxu0 0
    %1029 = vmatpush1.bf16.msra.mxu0 %v380
    %1030 = vmatprep.subr.bf16.mxu0 0
    %1031 = vmatpush2.bf16.msra.mxu0 0
    %1032 = vmatprep.subr.bf16.mxu0 0
    %1033 = vmatpush2.bf16.msra.mxu0 0
    %1034 = vmatprep.subr.bf16.mxu0 0
    %1035 = vmatpush2.bf16.msra.mxu0 0
    %1036 = vmatprep.subr.bf16.mxu0 0
    %1037 = vmatpush2.bf16.msra.mxu0 0
    %1038 = vmatprep.subr.bf16.mxu0 0
    %1039 = vmatpush2.bf16.msra.mxu0 0
    %1040 = vmatprep.subr.bf16.mxu0 0
    %1041 = vmatpush2.bf16.msra.mxu0 0
    %1042 = vmatprep.subr.bf16.mxu0 0
    %1043 = vmatpush2.bf16.msra.mxu0 0
    %1044 = vmatprep.subr.bf16.mxu0 0
    %1045 = vmatpush2.bf16.msra.mxu0 0
    %1046 = vmatprep.mubr.bf16.mxu0 0
    %1047 = vmatmul.mubr.bf16.gmra.mxu0 %v1012
    %v1048 = vpop.f32.mrf.mxu0
    %v1049 = vadd.f32 %v1006, %v1048
    %v1050 = vpop.f32.mrf.mxu0
    %v1051 = vpop.f32.mrf.mxu0
    %v1052 = vpop.f32.mrf.mxu0
    %1053 = vdwg.mxu0
    %1054 = vrot.lane.b32.xlu0 %v746, 112
    %v1055 = vpop.permute.xlu0 %1054
    %1056 = vrot.lane.b32.xlu0 %v746, 80
    %v1057 = vpop.permute.xlu0 %1056
    %v1059 = vsel %vm110, %v1055, 0
    %v1062 = vsel %vm110, %v1057, 0
    %1064 = vmatprep.subr.bf16.mxu0 0
    %1065 = vmatpush1.bf16.xpose.msra.mxu0 0
    %1066 = vmatprep.subr.bf16.mxu0 0
    %1067 = vmatpush1.bf16.xpose.msra.mxu0 0
    %1068 = vmatprep.subr.bf16.mxu0 0
    %1069 = vmatpush1.bf16.xpose.msra.mxu0 0
    %1070 = vmatprep.subr.bf16.mxu0 0
    %1071 = vmatpush1.bf16.xpose.msra.mxu0 0
    %1072 = vmatprep.subr.bf16.mxu0 0
    %1073 = vmatpush1.bf16.xpose.msra.mxu0 0
    %1074 = vmatprep.subr.bf16.mxu0 0
    %1075 = vmatpush1.bf16.xpose.msra.mxu0 0
    %1076 = vmatprep.subr.bf16.mxu0 0
    %1077 = vmatpush1.bf16.xpose.msra.mxu0 0
    %1078 = vmatprep.subr.bf16.mxu0 0
    %1079 = vmatpush1.bf16.xpose.msra.mxu0 %v1062
    %1080 = vmatprep.subr.bf16.mxu0 0
    %1081 = vmatpush2.bf16.xpose.msra.mxu0 0
    %1082 = vmatprep.subr.bf16.mxu0 0
    %1083 = vmatpush2.bf16.xpose.msra.mxu0 0
    %1084 = vmatprep.subr.bf16.mxu0 0
    %1085 = vmatpush2.bf16.xpose.msra.mxu0 0
    %1086 = vmatprep.subr.bf16.mxu0 0
    %1087 = vmatpush2.bf16.xpose.msra.mxu0 0
    %1088 = vmatprep.subr.bf16.mxu0 0
    %1089 = vmatpush2.bf16.xpose.msra.mxu0 0
    %1090 = vmatprep.subr.bf16.mxu0 0
    %1091 = vmatpush2.bf16.xpose.msra.mxu0 0
    %1092 = vmatprep.subr.bf16.mxu0 0
    %1093 = vmatpush2.bf16.xpose.msra.mxu0 0
    %1094 = vmatprep.subr.bf16.mxu0 0
    %1095 = vmatpush2.bf16.xpose.msra.mxu0 0
    %1096 = vmatprep.mubr.bf16.mxu0 0
    %1097 = vmatmul.mubr.bf16.gmra.mxu0 %v1059
    %v1098 = vpop.f32.mrf.mxu0
    %v1099 = vadd.f32 0.0, %v1098
    %v1100 = vpop.f32.mrf.mxu0
    %v1101 = vpop.f32.mrf.mxu0
    %v1102 = vpop.f32.mrf.mxu0
    %1103 = vdwg.mxu0
    %v1104 = vsel %vm110, %v1099, -inf
    %1105 = vmax.xlane.f32.xlu0 %v1104
    %v1106 = vpop.xlane.xlu0 %1105
    %v1107 = vsub.f32 %v1099, %v1106
    %v1108 = vmul.f32 %v1107, 1.442695
    %v1109 = vpow.pop %v1108
    %v1110 = vsel %vm110, %v1109, 0.0
    %1111 = vadd.xlane.f32.xlu0 %v1110
    %v1112 = vpop.xlane.xlu0 %1111
    %v1113 = vrcp.pop %v1112
    %v1114 = vmul.f32 %v1109, %v1113
    %v1115 = vpack.c.bf16 %v1114, %v1114
    %1116 = vrot.lane.b32.xlu0 %v746, 48
    %v1117 = vpop.permute.xlu0 %1116
    %v1119 = vsel %vm110, %v1115, 0
    %v1122 = vsel %vm174, %v1117, 0
    %1124 = vmatprep.subr.bf16.mxu0 0
    %1125 = vmatpush1.bf16.msra.mxu0 0
    %1126 = vmatprep.subr.bf16.mxu0 0
    %1127 = vmatpush1.bf16.msra.mxu0 0
    %1128 = vmatprep.subr.bf16.mxu0 0
    %1129 = vmatpush1.bf16.msra.mxu0 0
    %1130 = vmatprep.subr.bf16.mxu0 0
    %1131 = vmatpush1.bf16.msra.mxu0 0
    %1132 = vmatprep.subr.bf16.mxu0 0
    %1133 = vmatpush1.bf16.msra.mxu0 0
    %1134 = vmatprep.subr.bf16.mxu0 0
    %1135 = vmatpush1.bf16.msra.mxu0 0
    %1136 = vmatprep.subr.bf16.mxu0 0
    %1137 = vmatpush1.bf16.msra.mxu0 0
    %1138 = vmatprep.subr.bf16.mxu0 0
    %1139 = vmatpush1.bf16.msra.mxu0 %v1122
    %1140 = vmatprep.subr.bf16.mxu0 0
    %1141 = vmatpush2.bf16.msra.mxu0 0
    %1142 = vmatprep.subr.bf16.mxu0 0
    %1143 = vmatpush2.bf16.msra.mxu0 0
    %1144 = vmatprep.subr.bf16.mxu0 0
    %1145 = vmatpush2.bf16.msra.mxu0 0
    %1146 = vmatprep.subr.bf16.mxu0 0
    %1147 = vmatpush2.bf16.msra.mxu0 0
    %1148 = vmatprep.subr.bf16.mxu0 0
    %1149 = vmatpush2.bf16.msra.mxu0 0
    %1150 = vmatprep.subr.bf16.mxu0 0
    %1151 = vmatpush2.bf16.msra.mxu0 0
    %1152 = vmatprep.subr.bf16.mxu0 0
    %1153 = vmatpush2.bf16.msra.mxu0 0
    %1154 = vmatprep.subr.bf16.mxu0 0
    %1155 = vmatpush2.bf16.msra.mxu0 0
    %1156 = vmatprep.mubr.bf16.mxu0 0
    %1157 = vmatmul.mubr.bf16.gmra.mxu0 %v1119
    %v1158 = vpop.f32.mrf.mxu0
    %v1159 = vadd.f32 0.0, %v1158
    %v1160 = vpop.f32.mrf.mxu0
    %v1161 = vpop.f32.mrf.mxu0
    %v1162 = vpop.f32.mrf.mxu0
    %1163 = vdwg.mxu0
    %v1164 = vpack.c.bf16 %v1159, %v1159
    %v1166 = vsel %vm110, %v1164, 0
    %1168 = vmatprep.subr.bf16.mxu0 0
    %1169 = vmatpush1.bf16.msra.mxu0 0
    %1170 = vmatprep.subr.bf16.mxu0 0
    %1171 = vmatpush1.bf16.msra.mxu0 0
    %1172 = vmatprep.subr.bf16.mxu0 0
    %1173 = vmatpush1.bf16.msra.mxu0 0
    %1174 = vmatprep.subr.bf16.mxu0 0
    %1175 = vmatpush1.bf16.msra.mxu0 0
    %1176 = vmatprep.subr.bf16.mxu0 0
    %1177 = vmatpush1.bf16.msra.mxu0 0
    %1178 = vmatprep.subr.bf16.mxu0 0
    %1179 = vmatpush1.bf16.msra.mxu0 0
    %1180 = vmatprep.subr.bf16.mxu0 0
    %1181 = vmatpush1.bf16.msra.mxu0 0
    %1182 = vmatprep.subr.bf16.mxu0 0
    %1183 = vmatpush1.bf16.msra.mxu0 %v537
    %1184 = vmatprep.subr.bf16.mxu0 0
    %1185 = vmatpush2.bf16.msra.mxu0 0
    %1186 = vmatprep.subr.bf16.mxu0 0
    %1187 = vmatpush2.bf16.msra.mxu0 0
    %1188 = vmatprep.subr.bf16.mxu0 0
    %1189 = vmatpush2.bf16.msra.mxu0 0
    %1190 = vmatprep.subr.bf16.mxu0 0
    %1191 = vmatpush2.bf16.msra.mxu0 0
    %1192 = vmatprep.subr.bf16.mxu0 0
    %1193 = vmatpush2.bf16.msra.mxu0 0
    %1194 = vmatprep.subr.bf16.mxu0 0
    %1195 = vmatpush2.bf16.msra.mxu0 0
    %1196 = vmatprep.subr.bf16.mxu0 0
    %1197 = vmatpush2.bf16.msra.mxu0 0
    %1198 = vmatprep.subr.bf16.mxu0 0
    %1199 = vmatpush2.bf16.msra.mxu0 0
    %1200 = vmatprep.mubr.bf16.mxu0 0
    %1201 = vmatmul.mubr.bf16.gmra.mxu0 %v1166
    %v1202 = vpop.f32.mrf.mxu0
    %v1203 = vadd.f32 0.0, %v1202
    %v1204 = vpop.f32.mrf.mxu0
    %v1205 = vpop.f32.mrf.mxu0
    %v1206 = vpop.f32.mrf.mxu0
    %1207 = vdwg.mxu0
    %v1208 = vadd.f32 %v1049, %v1203
    %1209 = vrot.lane.b32.xlu0 %v746, 104
    %v1210 = vpop.permute.xlu0 %1209
    %1211 = vrot.lane.b32.xlu0 %v746, 72
    %v1212 = vpop.permute.xlu0 %1211
    %v1214 = vsel %vm110, %v1210, 0
    %v1217 = vsel %vm110, %v1212, 0
    %1219 = vmatprep.subr.bf16.mxu0 0
    %1220 = vmatpush1.bf16.xpose.msra.mxu0 0
    %1221 = vmatprep.subr.bf16.mxu0 0
    %1222 = vmatpush1.bf16.xpose.msra.mxu0 0
    %1223 = vmatprep.subr.bf16.mxu0 0
    %1224 = vmatpush1.bf16.xpose.msra.mxu0 0
    %1225 = vmatprep.subr.bf16.mxu0 0
    %1226 = vmatpush1.bf16.xpose.msra.mxu0 0
    %1227 = vmatprep.subr.bf16.mxu0 0
    %1228 = vmatpush1.bf16.xpose.msra.mxu0 0
    %1229 = vmatprep.subr.bf16.mxu0 0
    %1230 = vmatpush1.bf16.xpose.msra.mxu0 0
    %1231 = vmatprep.subr.bf16.mxu0 0
    %1232 = vmatpush1.bf16.xpose.msra.mxu0 0
    %1233 = vmatprep.subr.bf16.mxu0 0
    %1234 = vmatpush1.bf16.xpose.msra.mxu0 %v1217
    %1235 = vmatprep.subr.bf16.mxu0 0
    %1236 = vmatpush2.bf16.xpose.msra.mxu0 0
    %1237 = vmatprep.subr.bf16.mxu0 0
    %1238 = vmatpush2.bf16.xpose.msra.mxu0 0
    %1239 = vmatprep.subr.bf16.mxu0 0
    %1240 = vmatpush2.bf16.xpose.msra.mxu0 0
    %1241 = vmatprep.subr.bf16.mxu0 0
    %1242 = vmatpush2.bf16.xpose.msra.mxu0 0
    %1243 = vmatprep.subr.bf16.mxu0 0
    %1244 = vmatpush2.bf16.xpose.msra.mxu0 0
    %1245 = vmatprep.subr.bf16.mxu0 0
    %1246 = vmatpush2.bf16.xpose.msra.mxu0 0
    %1247 = vmatprep.subr.bf16.mxu0 0
    %1248 = vmatpush2.bf16.xpose.msra.mxu0 0
    %1249 = vmatprep.subr.bf16.mxu0 0
    %1250 = vmatpush2.bf16.xpose.msra.mxu0 0
    %1251 = vmatprep.mubr.bf16.mxu0 0
    %1252 = vmatmul.mubr.bf16.gmra.mxu0 %v1214
    %v1253 = vpop.f32.mrf.mxu0
    %v1254 = vadd.f32 0.0, %v1253
    %v1255 = vpop.f32.mrf.mxu0
    %v1256 = vpop.f32.mrf.mxu0
    %v1257 = vpop.f32.mrf.mxu0
    %1258 = vdwg.mxu0
    %v1259 = vsel %vm110, %v1254, -inf
    %1260 = vmax.xlane.f32.xlu0 %v1259
    %v1261 = vpop.xlane.xlu0 %1260
    %v1262 = vsub.f32 %v1254, %v1261
    %v1263 = vmul.f32 %v1262, 1.442695
    %v1264 = vpow.pop %v1263
    %v1265 = vsel %vm110, %v1264, 0.0
    %1266 = vadd.xlane.f32.xlu0 %v1265
    %v1267 = vpop.xlane.xlu0 %1266
    %v1268 = vrcp.pop %v1267
    %v1269 = vmul.f32 %v1264, %v1268
    %v1270 = vpack.c.bf16 %v1269, %v1269
    %1271 = vrot.lane.b32.xlu0 %v746, 40
    %v1272 = vpop.permute.xlu0 %1271
    %v1274 = vsel %vm110, %v1270, 0
    %v1277 = vsel %vm174, %v1272, 0
    %1279 = vmatprep.subr.bf16.mxu0 0
    %1280 = vmatpush1.bf16.msra.mxu0 0
    %1281 = vmatprep.subr.bf16.mxu0 0
    %1282 = vmatpush1.bf16.msra.mxu0 0
    %1283 = vmatprep.subr.bf16.mxu0 0
    %1284 = vmatpush1.bf16.msra.mxu0 0
    %1285 = vmatprep.subr.bf16.mxu0 0
    %1286 = vmatpush1.bf16.msra.mxu0 0
    %1287 = vmatprep.subr.bf16.mxu0 0
    %1288 = vmatpush1.bf16.msra.mxu0 0
    %1289 = vmatprep.subr.bf16.mxu0 0
    %1290 = vmatpush1.bf16.msra.mxu0 0
    %1291 = vmatprep.subr.bf16.mxu0 0
    %1292 = vmatpush1.bf16.msra.mxu0 0
    %1293 = vmatprep.subr.bf16.mxu0 0
    %1294 = vmatpush1.bf16.msra.mxu0 %v1277
    %1295 = vmatprep.subr.bf16.mxu0 0
    %1296 = vmatpush2.bf16.msra.mxu0 0
    %1297 = vmatprep.subr.bf16.mxu0 0
    %1298 = vmatpush2.bf16.msra.mxu0 0
    %1299 = vmatprep.subr.bf16.mxu0 0
    %1300 = vmatpush2.bf16.msra.mxu0 0
    %1301 = vmatprep.subr.bf16.mxu0 0
    %1302 = vmatpush2.bf16.msra.mxu0 0
    %1303 = vmatprep.subr.bf16.mxu0 0
    %1304 = vmatpush2.bf16.msra.mxu0 0
    %1305 = vmatprep.subr.bf16.mxu0 0
    %1306 = vmatpush2.bf16.msra.mxu0 0
    %1307 = vmatprep.subr.bf16.mxu0 0
    %1308 = vmatpush2.bf16.msra.mxu0 0
    %1309 = vmatprep.subr.bf16.mxu0 0
    %1310 = vmatpush2.bf16.msra.mxu0 0
    %1311 = vmatprep.mubr.bf16.mxu0 0
    %1312 = vmatmul.mubr.bf16.gmra.mxu0 %v1274
    %v1313 = vpop.f32.mrf.mxu0
    %v1314 = vadd.f32 0.0, %v1313
    %v1315 = vpop.f32.mrf.mxu0
    %v1316 = vpop.f32.mrf.mxu0
    %v1317 = vpop.f32.mrf.mxu0
    %1318 = vdwg.mxu0
    %v1319 = vpack.c.bf16 %v1314, %v1314
    %v1321 = vsel %vm110, %v1319, 0
    %1323 = vmatprep.subr.bf16.mxu0 0
    %1324 = vmatpush1.bf16.msra.mxu0 0
    %1325 = vmatprep.subr.bf16.mxu0 0
    %1326 = vmatpush1.bf16.msra.mxu0 0
    %1327 = vmatprep.subr.bf16.mxu0 0
    %1328 = vmatpush1.bf16.msra.mxu0 0
    %1329 = vmatprep.subr.bf16.mxu0 0
    %1330 = vmatpush1.bf16.msra.mxu0 0
    %1331 = vmatprep.subr.bf16.mxu0 0
    %1332 = vmatpush1.bf16.msra.mxu0 0
    %1333 = vmatprep.subr.bf16.mxu0 0
    %1334 = vmatpush1.bf16.msra.mxu0 0
    %1335 = vmatprep.subr.bf16.mxu0 0
    %1336 = vmatpush1.bf16.msra.mxu0 0
    %1337 = vmatprep.subr.bf16.mxu0 0
    %1338 = vmatpush1.bf16.msra.mxu0 %v695
    %1339 = vmatprep.subr.bf16.mxu0 0
    %1340 = vmatpush2.bf16.msra.mxu0 0
    %1341 = vmatprep.subr.bf16.mxu0 0
    %1342 = vmatpush2.bf16.msra.mxu0 0
    %1343 = vmatprep.subr.bf16.mxu0 0
    %1344 = vmatpush2.bf16.msra.mxu0 0
    %1345 = vmatprep.subr.bf16.mxu0 0
    %1346 = vmatpush2.bf16.msra.mxu0 0
    %1347 = vmatprep.subr.bf16.mxu0 0
    %1348 = vmatpush2.bf16.msra.mxu0 0
    %1349 = vmatprep.subr.bf16.mxu0 0
    %1350 = vmatpush2.bf16.msra.mxu0 0
    %1351 = vmatprep.subr.bf16.mxu0 0
    %1352 = vmatpush2.bf16.msra.mxu0 0
    %1353 = vmatprep.subr.bf16.mxu0 0
    %1354 = vmatpush2.bf16.msra.mxu0 0
    %1355 = vmatprep.mubr.bf16.mxu0 0
    %1356 = vmatmul.mubr.bf16.gmra.mxu0 %v1321
    %v1357 = vpop.f32.mrf.mxu0
    %v1358 = vadd.f32 0.0, %v1357
    %v1359 = vpop.f32.mrf.mxu0
    %v1360 = vpop.f32.mrf.mxu0
    %v1361 = vpop.f32.mrf.mxu0
    %1362 = vdwg.mxu0
    %v1363 = vadd.f32 %v1208, %v1358
    %v1364 = vadd.f32 %v1363, %v742
    %1365 = vst.msk [vmem:[#allocation5 + $0x8] sm:$0xff] %vm56, %v1364
    // Predicated region
    $region22: #{mha_forward.1} parent=1 // pred_check
      _
    $region23: #{mha_forward.1} parent=1 // pred_check_branch
      %1367 = sbr.rel (0) target = $region25
    $region24: #{mha_forward.1} parent=1 // pred_region
      %s1369 = ssub.s32 256, 256
      %1370 = vsyncadd [#allocation4], %s1369
      %s1371 = sshll.u32 [#allocation5], 4
      %s1372 = int_to_ptr.vmem [resolvable:$true] %s1371
      %1377 = dma.vmem_to_hbm [thread:$0]  %s1372, 256, %s4, [#allocation4], 128, 128, 8
    $region25: #{mha_forward.1} parent=1 // pred_fallthru
      _
    // Predicated region
    $region26: #{mha_forward.1} parent=1 // pred_check
      _
    $region27: #{mha_forward.1} parent=1 // pred_check_branch
      %1379 = sbr.rel (0) target = $region29
    $region28: #{mha_forward.1} parent=1 // pred_region
      %1380 = dma.done [#allocation4], 256
    $region29: #{mha_forward.1} parent=1 // pred_fallthru
      _
    %1381 = vsyncpa [#allocation3], 1
    %1382 = vsyncpa [#allocation4], 1

</llo_original>
